<compile_context>
chip_gen: v7x
topology: tpu7x:2x2x1
jax: 0.10.0
libtpu: 0.0.40
codegen_flags: <defaults>
</compile_context>

<pallas_src>
import functools

import jax
import jax.numpy as jnp
import numpy as np
from jax.experimental import pallas as pl
from jax.experimental.pallas import tpu as pltpu


# ----------------------------- configs -----------------------------------
class Configs:
    num_layers = 4        # num_spheres_or_occlusions (channels of the "ones" buffer)
    num_basis = 3         # > 1 -> conv path is active
    basis_layers = 2      # number of 1x1 conv layers
    height = 16
    width = 16


# ----------------------------- kernel -------------------------------------
def _basis_kernel(*refs, layer_sizes, c_out, num_ones):
    """refs = (x_ref, w0, b0, w1, b1, ..., o_ref).

    x_ref : VMEM (B, C_in, TP)      pixels on lanes
    w_i   : SMEM (C_out_i, C_in_i)  read element-wise (scalar broadcasts)
    b_i   : SMEM (C_out_i,)
    o_ref : VMEM (B, c_out+num_ones, TP)
    """
    n_layers = len(layer_sizes)
    x_ref = refs[0]
    o_ref = refs[1 + 2 * n_layers]
    B, c_in, TP = x_ref.shape

    # Per-channel activations as full-lane (B, TP) tiles.
    h = [x_ref[:, k, :].astype(jnp.float32) for k in range(c_in)]

    for i, (ci, co) in enumerate(layer_sizes):
        w_ref = refs[1 + 2 * i]          # (co, ci) in SMEM
        b_ref = refs[2 + 2 * i]          # (co,)    in SMEM
        last = i == n_layers - 1
        new_h = []
        for o in range(co):
            # VPU broadcast-FMA over the tiny channel dimension.
            acc = h[0] * w_ref[o, 0]
            for k in range(1, ci):
                acc = acc + h[k] * w_ref[o, k]
            acc = acc + b_ref[o]
            if not last:
                acc = jnp.maximum(acc, 0.0)      # ReLU on all-but-last layer
            new_h.append(acc)
        h = new_h

    # Final tanh (EUP) + full-lane stores of the computed channels.
    for o in range(c_out):
        o_ref[:, o, :] = jnp.tanh(h[o])

    # torch.cat([x, ones], dim=1): ones channels, full-lane stores.
    o_ref[:, c_out:c_out + num_ones, :] = jnp.ones((B, num_ones, TP), jnp.float32)


def _pick_tile(P, max_tile=8192):
    """Largest pixel tile that keeps lane-dense blocks; single block for small P."""
    if P <= max_tile:
        return P                         # whole problem in one grid step
    if P % 128 == 0:
        t = (max_tile // 128) * 128
        while t >= 128:
            if P % t == 0:
                return t
            t -= 128
    return P                             # fallback: full extent (always legal)


def basis_forward(input_vecs, weights, biases, configs, *, max_tile=8192):
    """input_vecs: NCHW float32 [B, 3, H, W] -> NCHW float32 [B, num_b + num_layers, H, W].

    weights[i]: (C_out_i, C_in_i)  (Conv2d 1x1 weight with the trailing 1x1 squeezed)
    biases[i] : (C_out_i,)
    """
    B, C_in, H, W = input_vecs.shape
    num_ones = configs.num_layers

    if configs.num_basis == 1:
        # Degenerate path: module just returns the expanded ones buffer.
        return jnp.ones((B, num_ones, H, W), jnp.float32)

    n_layers = len(weights)
    c_out = int(weights[-1].shape[0])            # (num_basis - 1) * num_layers
    total_c = c_out + num_ones
    P = H * W

    # NCHW -> (B, C, H*W): pure reshape, no transpose. Pixels land on lanes.
    x3 = input_vecs.reshape(B, C_in, P)

    tile_p = _pick_tile(P, max_tile)
    grid = (P // tile_p,)
    # NOTE (v7x): when P scales up, _pick_tile yields >=2 pixel blocks and the
    # "parallel" axis lets the two TensorCores split them; at this tiny size a
    # single step is faster than paying per-step pipeline overhead.

    layer_sizes = tuple((int(w.shape[1]), int(w.shape[0])) for w in weights)
    kernel = functools.partial(
        _basis_kernel, layer_sizes=layer_sizes, c_out=c_out, num_ones=num_ones
    )

    smem_spec = pl.BlockSpec(memory_space=pltpu.MemorySpace.SMEM)
    in_specs = [pl.BlockSpec((B, C_in, tile_p), lambda i: (0, 0, i))]
    operands = [x3]
    for w, b in zip(weights, biases):
        in_specs.append(smem_spec)               # tiny weights live in SMEM
        in_specs.append(smem_spec)               # biases too
        operands.append(w)
        operands.append(b)

    out3 = pl.pallas_call(
        kernel,
        out_shape=jax.ShapeDtypeStruct((B, total_c, P), jnp.float32),
        grid_spec=pltpu.PrefetchScalarGridSpec(
            num_scalar_prefetch=0,
            grid=grid,
            in_specs=in_specs,
            out_specs=pl.BlockSpec((B, total_c, tile_p), lambda i: (0, 0, i)),
        ),
        compiler_params=pltpu.CompilerParams(dimension_semantics=("parallel",)),
    )(*operands)

    # (B, C_total, H*W) -> NCHW: pure reshape, no transpose.
    return out3.reshape(B, total_c, H, W)


# ----------------------------- reference (plain JAX) -----------------------
def basis_reference(input_vecs, weights, biases, configs):
    B = input_vecs.shape[0]
    x = jnp.transpose(input_vecs, (0, 2, 3, 1))              # NHWC
    for i, (w, b) in enumerate(zip(weights, biases)):
        x = jnp.einsum("bhwc,oc->bhwo", x, w,
                       precision=jax.lax.Precision.HIGHEST) + b
        if i != len(weights) - 1:
            x = jnp.maximum(x, 0.0)
    x = jnp.tanh(x)
    ones = jnp.ones((B, configs.height, configs.width, configs.num_layers), jnp.float32)
    x = jnp.concatenate([x, ones], axis=-1)
    return jnp.transpose(x, (0, 3, 1, 2))                    # back to NCHW


# ----------------------------- main ----------------------------------------
if __name__ == "__main__":
    cfg = Configs()

    # Layer sizing exactly as the PyTorch __init__:
    num_inputs = 3
    num_b = (cfg.num_basis - 1) * cfg.num_layers             # 8
    lin = np.linspace(num_inputs, num_b, cfg.basis_layers)
    input_sizes = [int(v) for v in lin]                      # [3, 8]
    output_sizes = input_sizes[1:] + [num_b]                 # [8, 8]

    key = jax.random.PRNGKey(0)
    weights, biases = [], []
    for i_sz, o_sz in zip(input_sizes, output_sizes):
        key, kw, kb = jax.random.split(key, 3)
        # Conv2d 1x1 == dense (out, in) weight; deterministic synthetic init.
        bound = 1.0 / np.sqrt(i_sz)
        weights.append(jax.random.uniform(kw, (o_sz, i_sz), jnp.float32, -bound, bound))
        biases.append(jax.random.uniform(kb, (o_sz,), jnp.float32, -bound, bound))

    # input_vecs: NCHW [B, 3, H, W]
    key, kx = jax.random.split(key)
    x = jax.random.normal(kx, (2, 3, cfg.height, cfg.width), jnp.float32)

    out = basis_forward(x, weights, biases, cfg)
    out = jax.block_until_ready(out)

    ref = basis_reference(x, weights, biases, cfg)
    assert out.shape == (2, num_b + cfg.num_layers, cfg.height, cfg.width), out.shape
    np.testing.assert_allclose(np.asarray(out), np.asarray(ref), atol=1e-5, rtol=1e-5)

    print("KERNEL_OK")
</pallas_src>

<mosaic_0001>
module attributes {stable_mosaic.version = 11 : i64} {
  func.func @_basis_kernel(%arg0: i32, %arg1: memref<2x3x256xf32, #tpu.memory_space<vmem>>, %arg2: memref<8x3xf32, #tpu.memory_space<smem>>, %arg3: memref<8xf32, #tpu.memory_space<smem>>, %arg4: memref<8x8xf32, #tpu.memory_space<smem>>, %arg5: memref<8xf32, #tpu.memory_space<smem>>, %arg6: memref<2x12x256xf32, #tpu.memory_space<vmem>>) attributes {dimension_semantics = [#tpu.dimension_semantics<parallel>], iteration_bounds = array<i64: 1>, scalar_prefetch = 0 : i64, scratch_operands = 0 : i64, tpu.core_type = #tpu.core_type<tc>, window_params = [{transform_indices = @transform_0, window_bounds = array<i64: 2, 3, 256>}, {transform_indices = @transform_1, window_bounds = array<i64: 8, 3>}, {transform_indices = @transform_2, window_bounds = array<i64: 8>}, {transform_indices = @transform_3, window_bounds = array<i64: 8, 8>}, {transform_indices = @transform_4, window_bounds = array<i64: 8>}, {transform_indices = @transform_5, window_bounds = array<i64: 2, 12, 256>}]} {
    %c0 = arith.constant 0 : index
    %c0_0 = arith.constant 0 : index
    %c0_1 = arith.constant 0 : index
    %0 = vector.load %arg1[%c0, %c0_0, %c0_1] : memref<2x3x256xf32, #tpu.memory_space<vmem>>, vector<2x1x256xf32>
    %1 = vector.shape_cast %0 : vector<2x1x256xf32> to vector<2x256xf32>
    %c0_2 = arith.constant 0 : index
    %c1 = arith.constant 1 : index
    %c0_3 = arith.constant 0 : index
    %2 = vector.load %arg1[%c0_2, %c1, %c0_3] : memref<2x3x256xf32, #tpu.memory_space<vmem>>, vector<2x1x256xf32>
    %3 = vector.shape_cast %2 : vector<2x1x256xf32> to vector<2x256xf32>
    %c0_4 = arith.constant 0 : index
    %c2 = arith.constant 2 : index
    %c0_5 = arith.constant 0 : index
    %4 = vector.load %arg1[%c0_4, %c2, %c0_5] : memref<2x3x256xf32, #tpu.memory_space<vmem>>, vector<2x1x256xf32>
    %5 = vector.shape_cast %4 : vector<2x1x256xf32> to vector<2x256xf32>
    %c0_6 = arith.constant 0 : index
    %c0_7 = arith.constant 0 : index
    %6 = memref.load %arg2[%c0_6, %c0_7] : memref<8x3xf32, #tpu.memory_space<smem>>
    %7 = vector.broadcast %6 : f32 to vector<2x256xf32>
    %8 = arith.mulf %1, %7 : vector<2x256xf32>
    %c0_8 = arith.constant 0 : index
    %c1_9 = arith.constant 1 : index
    %9 = memref.load %arg2[%c0_8, %c1_9] : memref<8x3xf32, #tpu.memory_space<smem>>
    %10 = vector.broadcast %9 : f32 to vector<2x256xf32>
    %11 = arith.mulf %3, %10 : vector<2x256xf32>
    %12 = arith.addf %8, %11 : vector<2x256xf32>
    %c0_10 = arith.constant 0 : index
    %c2_11 = arith.constant 2 : index
    %13 = memref.load %arg2[%c0_10, %c2_11] : memref<8x3xf32, #tpu.memory_space<smem>>
    %14 = vector.broadcast %13 : f32 to vector<2x256xf32>
    %15 = arith.mulf %5, %14 : vector<2x256xf32>
    %16 = arith.addf %12, %15 : vector<2x256xf32>
    %c0_12 = arith.constant 0 : index
    %17 = memref.load %arg3[%c0_12] : memref<8xf32, #tpu.memory_space<smem>>
    %18 = vector.broadcast %17 : f32 to vector<2x256xf32>
    %19 = arith.addf %16, %18 : vector<2x256xf32>
    %cst = arith.constant 0.000000e+00 : f32
    %20 = vector.broadcast %cst : f32 to vector<2x256xf32>
    %21 = arith.maximumf %19, %20 : vector<2x256xf32>
    %c1_13 = arith.constant 1 : index
    %c0_14 = arith.constant 0 : index
    %22 = memref.load %arg2[%c1_13, %c0_14] : memref<8x3xf32, #tpu.memory_space<smem>>
    %23 = vector.broadcast %22 : f32 to vector<2x256xf32>
    %24 = arith.mulf %1, %23 : vector<2x256xf32>
    %c1_15 = arith.constant 1 : index
    %c1_16 = arith.constant 1 : index
    %25 = memref.load %arg2[%c1_15, %c1_16] : memref<8x3xf32, #tpu.memory_space<smem>>
    %26 = vector.broadcast %25 : f32 to vector<2x256xf32>
    %27 = arith.mulf %3, %26 : vector<2x256xf32>
    %28 = arith.addf %24, %27 : vector<2x256xf32>
    %c1_17 = arith.constant 1 : index
    %c2_18 = arith.constant 2 : index
    %29 = memref.load %arg2[%c1_17, %c2_18] : memref<8x3xf32, #tpu.memory_space<smem>>
    %30 = vector.broadcast %29 : f32 to vector<2x256xf32>
    %31 = arith.mulf %5, %30 : vector<2x256xf32>
    %32 = arith.addf %28, %31 : vector<2x256xf32>
    %c1_19 = arith.constant 1 : index
    %33 = memref.load %arg3[%c1_19] : memref<8xf32, #tpu.memory_space<smem>>
    %34 = vector.broadcast %33 : f32 to vector<2x256xf32>
    %35 = arith.addf %32, %34 : vector<2x256xf32>
    %cst_20 = arith.constant 0.000000e+00 : f32
    %36 = vector.broadcast %cst_20 : f32 to vector<2x256xf32>
    %37 = arith.maximumf %35, %36 : vector<2x256xf32>
    %c2_21 = arith.constant 2 : index
    %c0_22 = arith.constant 0 : index
    %38 = memref.load %arg2[%c2_21, %c0_22] : memref<8x3xf32, #tpu.memory_space<smem>>
    %39 = vector.broadcast %38 : f32 to vector<2x256xf32>
    %40 = arith.mulf %1, %39 : vector<2x256xf32>
    %c2_23 = arith.constant 2 : index
    %c1_24 = arith.constant 1 : index
    %41 = memref.load %arg2[%c2_23, %c1_24] : memref<8x3xf32, #tpu.memory_space<smem>>
    %42 = vector.broadcast %41 : f32 to vector<2x256xf32>
    %43 = arith.mulf %3, %42 : vector<2x256xf32>
    %44 = arith.addf %40, %43 : vector<2x256xf32>
    %c2_25 = arith.constant 2 : index
    %c2_26 = arith.constant 2 : index
    %45 = memref.load %arg2[%c2_25, %c2_26] : memref<8x3xf32, #tpu.memory_space<smem>>
    %46 = vector.broadcast %45 : f32 to vector<2x256xf32>
    %47 = arith.mulf %5, %46 : vector<2x256xf32>
    %48 = arith.addf %44, %47 : vector<2x256xf32>
    %c2_27 = arith.constant 2 : index
    %49 = memref.load %arg3[%c2_27] : memref<8xf32, #tpu.memory_space<smem>>
    %50 = vector.broadcast %49 : f32 to vector<2x256xf32>
    %51 = arith.addf %48, %50 : vector<2x256xf32>
    %cst_28 = arith.constant 0.000000e+00 : f32
    %52 = vector.broadcast %cst_28 : f32 to vector<2x256xf32>
    %53 = arith.maximumf %51, %52 : vector<2x256xf32>
    %c3 = arith.constant 3 : index
    %c0_29 = arith.constant 0 : index
    %54 = memref.load %arg2[%c3, %c0_29] : memref<8x3xf32, #tpu.memory_space<smem>>
    %55 = vector.broadcast %54 : f32 to vector<2x256xf32>
    %56 = arith.mulf %1, %55 : vector<2x256xf32>
    %c3_30 = arith.constant 3 : index
    %c1_31 = arith.constant 1 : index
    %57 = memref.load %arg2[%c3_30, %c1_31] : memref<8x3xf32, #tpu.memory_space<smem>>
    %58 = vector.broadcast %57 : f32 to vector<2x256xf32>
    %59 = arith.mulf %3, %58 : vector<2x256xf32>
    %60 = arith.addf %56, %59 : vector<2x256xf32>
    %c3_32 = arith.constant 3 : index
    %c2_33 = arith.constant 2 : index
    %61 = memref.load %arg2[%c3_32, %c2_33] : memref<8x3xf32, #tpu.memory_space<smem>>
    %62 = vector.broadcast %61 : f32 to vector<2x256xf32>
    %63 = arith.mulf %5, %62 : vector<2x256xf32>
    %64 = arith.addf %60, %63 : vector<2x256xf32>
    %c3_34 = arith.constant 3 : index
    %65 = memref.load %arg3[%c3_34] : memref<8xf32, #tpu.memory_space<smem>>
    %66 = vector.broadcast %65 : f32 to vector<2x256xf32>
    %67 = arith.addf %64, %66 : vector<2x256xf32>
    %cst_35 = arith.constant 0.000000e+00 : f32
    %68 = vector.broadcast %cst_35 : f32 to vector<2x256xf32>
    %69 = arith.maximumf %67, %68 : vector<2x256xf32>
    %c4 = arith.constant 4 : index
    %c0_36 = arith.constant 0 : index
    %70 = memref.load %arg2[%c4, %c0_36] : memref<8x3xf32, #tpu.memory_space<smem>>
    %71 = vector.broadcast %70 : f32 to vector<2x256xf32>
    %72 = arith.mulf %1, %71 : vector<2x256xf32>
    %c4_37 = arith.constant 4 : index
    %c1_38 = arith.constant 1 : index
    %73 = memref.load %arg2[%c4_37, %c1_38] : memref<8x3xf32, #tpu.memory_space<smem>>
    %74 = vector.broadcast %73 : f32 to vector<2x256xf32>
    %75 = arith.mulf %3, %74 : vector<2x256xf32>
    %76 = arith.addf %72, %75 : vector<2x256xf32>
    %c4_39 = arith.constant 4 : index
    %c2_40 = arith.constant 2 : index
    %77 = memref.load %arg2[%c4_39, %c2_40] : memref<8x3xf32, #tpu.memory_space<smem>>
    %78 = vector.broadcast %77 : f32 to vector<2x256xf32>
    %79 = arith.mulf %5, %78 : vector<2x256xf32>
    %80 = arith.addf %76, %79 : vector<2x256xf32>
    %c4_41 = arith.constant 4 : index
    %81 = memref.load %arg3[%c4_41] : memref<8xf32, #tpu.memory_space<smem>>
    %82 = vector.broadcast %81 : f32 to vector<2x256xf32>
    %83 = arith.addf %80, %82 : vector<2x256xf32>
    %cst_42 = arith.constant 0.000000e+00 : f32
    %84 = vector.broadcast %cst_42 : f32 to vector<2x256xf32>
    %85 = arith.maximumf %83, %84 : vector<2x256xf32>
    %c5 = arith.constant 5 : index
    %c0_43 = arith.constant 0 : index
    %86 = memref.load %arg2[%c5, %c0_43] : memref<8x3xf32, #tpu.memory_space<smem>>
    %87 = vector.broadcast %86 : f32 to vector<2x256xf32>
    %88 = arith.mulf %1, %87 : vector<2x256xf32>
    %c5_44 = arith.constant 5 : index
    %c1_45 = arith.constant 1 : index
    %89 = memref.load %arg2[%c5_44, %c1_45] : memref<8x3xf32, #tpu.memory_space<smem>>
    %90 = vector.broadcast %89 : f32 to vector<2x256xf32>
    %91 = arith.mulf %3, %90 : vector<2x256xf32>
    %92 = arith.addf %88, %91 : vector<2x256xf32>
    %c5_46 = arith.constant 5 : index
    %c2_47 = arith.constant 2 : index
    %93 = memref.load %arg2[%c5_46, %c2_47] : memref<8x3xf32, #tpu.memory_space<smem>>
    %94 = vector.broadcast %93 : f32 to vector<2x256xf32>
    %95 = arith.mulf %5, %94 : vector<2x256xf32>
    %96 = arith.addf %92, %95 : vector<2x256xf32>
    %c5_48 = arith.constant 5 : index
    %97 = memref.load %arg3[%c5_48] : memref<8xf32, #tpu.memory_space<smem>>
    %98 = vector.broadcast %97 : f32 to vector<2x256xf32>
    %99 = arith.addf %96, %98 : vector<2x256xf32>
    %cst_49 = arith.constant 0.000000e+00 : f32
    %100 = vector.broadcast %cst_49 : f32 to vector<2x256xf32>
    %101 = arith.maximumf %99, %100 : vector<2x256xf32>
    %c6 = arith.constant 6 : index
    %c0_50 = arith.constant 0 : index
    %102 = memref.load %arg2[%c6, %c0_50] : memref<8x3xf32, #tpu.memory_space<smem>>
    %103 = vector.broadcast %102 : f32 to vector<2x256xf32>
    %104 = arith.mulf %1, %103 : vector<2x256xf32>
    %c6_51 = arith.constant 6 : index
    %c1_52 = arith.constant 1 : index
    %105 = memref.load %arg2[%c6_51, %c1_52] : memref<8x3xf32, #tpu.memory_space<smem>>
    %106 = vector.broadcast %105 : f32 to vector<2x256xf32>
    %107 = arith.mulf %3, %106 : vector<2x256xf32>
    %108 = arith.addf %104, %107 : vector<2x256xf32>
    %c6_53 = arith.constant 6 : index
    %c2_54 = arith.constant 2 : index
    %109 = memref.load %arg2[%c6_53, %c2_54] : memref<8x3xf32, #tpu.memory_space<smem>>
    %110 = vector.broadcast %109 : f32 to vector<2x256xf32>
    %111 = arith.mulf %5, %110 : vector<2x256xf32>
    %112 = arith.addf %108, %111 : vector<2x256xf32>
    %c6_55 = arith.constant 6 : index
    %113 = memref.load %arg3[%c6_55] : memref<8xf32, #tpu.memory_space<smem>>
    %114 = vector.broadcast %113 : f32 to vector<2x256xf32>
    %115 = arith.addf %112, %114 : vector<2x256xf32>
    %cst_56 = arith.constant 0.000000e+00 : f32
    %116 = vector.broadcast %cst_56 : f32 to vector<2x256xf32>
    %117 = arith.maximumf %115, %116 : vector<2x256xf32>
    %c7 = arith.constant 7 : index
    %c0_57 = arith.constant 0 : index
    %118 = memref.load %arg2[%c7, %c0_57] : memref<8x3xf32, #tpu.memory_space<smem>>
    %119 = vector.broadcast %118 : f32 to vector<2x256xf32>
    %120 = arith.mulf %1, %119 : vector<2x256xf32>
    %c7_58 = arith.constant 7 : index
    %c1_59 = arith.constant 1 : index
    %121 = memref.load %arg2[%c7_58, %c1_59] : memref<8x3xf32, #tpu.memory_space<smem>>
    %122 = vector.broadcast %121 : f32 to vector<2x256xf32>
    %123 = arith.mulf %3, %122 : vector<2x256xf32>
    %124 = arith.addf %120, %123 : vector<2x256xf32>
    %c7_60 = arith.constant 7 : index
    %c2_61 = arith.constant 2 : index
    %125 = memref.load %arg2[%c7_60, %c2_61] : memref<8x3xf32, #tpu.memory_space<smem>>
    %126 = vector.broadcast %125 : f32 to vector<2x256xf32>
    %127 = arith.mulf %5, %126 : vector<2x256xf32>
    %128 = arith.addf %124, %127 : vector<2x256xf32>
    %c7_62 = arith.constant 7 : index
    %129 = memref.load %arg3[%c7_62] : memref<8xf32, #tpu.memory_space<smem>>
    %130 = vector.broadcast %129 : f32 to vector<2x256xf32>
    %131 = arith.addf %128, %130 : vector<2x256xf32>
    %cst_63 = arith.constant 0.000000e+00 : f32
    %132 = vector.broadcast %cst_63 : f32 to vector<2x256xf32>
    %133 = arith.maximumf %131, %132 : vector<2x256xf32>
    %c0_64 = arith.constant 0 : index
    %c0_65 = arith.constant 0 : index
    %134 = memref.load %arg4[%c0_64, %c0_65] : memref<8x8xf32, #tpu.memory_space<smem>>
    %135 = vector.broadcast %134 : f32 to vector<2x256xf32>
    %136 = arith.mulf %21, %135 : vector<2x256xf32>
    %c0_66 = arith.constant 0 : index
    %c1_67 = arith.constant 1 : index
    %137 = memref.load %arg4[%c0_66, %c1_67] : memref<8x8xf32, #tpu.memory_space<smem>>
    %138 = vector.broadcast %137 : f32 to vector<2x256xf32>
    %139 = arith.mulf %37, %138 : vector<2x256xf32>
    %140 = arith.addf %136, %139 : vector<2x256xf32>
    %c0_68 = arith.constant 0 : index
    %c2_69 = arith.constant 2 : index
    %141 = memref.load %arg4[%c0_68, %c2_69] : memref<8x8xf32, #tpu.memory_space<smem>>
    %142 = vector.broadcast %141 : f32 to vector<2x256xf32>
    %143 = arith.mulf %53, %142 : vector<2x256xf32>
    %144 = arith.addf %140, %143 : vector<2x256xf32>
    %c0_70 = arith.constant 0 : index
    %c3_71 = arith.constant 3 : index
    %145 = memref.load %arg4[%c0_70, %c3_71] : memref<8x8xf32, #tpu.memory_space<smem>>
    %146 = vector.broadcast %145 : f32 to vector<2x256xf32>
    %147 = arith.mulf %69, %146 : vector<2x256xf32>
    %148 = arith.addf %144, %147 : vector<2x256xf32>
    %c0_72 = arith.constant 0 : index
    %c4_73 = arith.constant 4 : index
    %149 = memref.load %arg4[%c0_72, %c4_73] : memref<8x8xf32, #tpu.memory_space<smem>>
    %150 = vector.broadcast %149 : f32 to vector<2x256xf32>
    %151 = arith.mulf %85, %150 : vector<2x256xf32>
    %152 = arith.addf %148, %151 : vector<2x256xf32>
    %c0_74 = arith.constant 0 : index
    %c5_75 = arith.constant 5 : index
    %153 = memref.load %arg4[%c0_74, %c5_75] : memref<8x8xf32, #tpu.memory_space<smem>>
    %154 = vector.broadcast %153 : f32 to vector<2x256xf32>
    %155 = arith.mulf %101, %154 : vector<2x256xf32>
    %156 = arith.addf %152, %155 : vector<2x256xf32>
    %c0_76 = arith.constant 0 : index
    %c6_77 = arith.constant 6 : index
    %157 = memref.load %arg4[%c0_76, %c6_77] : memref<8x8xf32, #tpu.memory_space<smem>>
    %158 = vector.broadcast %157 : f32 to vector<2x256xf32>
    %159 = arith.mulf %117, %158 : vector<2x256xf32>
    %160 = arith.addf %156, %159 : vector<2x256xf32>
    %c0_78 = arith.constant 0 : index
    %c7_79 = arith.constant 7 : index
    %161 = memref.load %arg4[%c0_78, %c7_79] : memref<8x8xf32, #tpu.memory_space<smem>>
    %162 = vector.broadcast %161 : f32 to vector<2x256xf32>
    %163 = arith.mulf %133, %162 : vector<2x256xf32>
    %164 = arith.addf %160, %163 : vector<2x256xf32>
    %c0_80 = arith.constant 0 : index
    %165 = memref.load %arg5[%c0_80] : memref<8xf32, #tpu.memory_space<smem>>
    %166 = vector.broadcast %165 : f32 to vector<2x256xf32>
    %167 = arith.addf %164, %166 : vector<2x256xf32>
    %c1_81 = arith.constant 1 : index
    %c0_82 = arith.constant 0 : index
    %168 = memref.load %arg4[%c1_81, %c0_82] : memref<8x8xf32, #tpu.memory_space<smem>>
    %169 = vector.broadcast %168 : f32 to vector<2x256xf32>
    %170 = arith.mulf %21, %169 : vector<2x256xf32>
    %c1_83 = arith.constant 1 : index
    %c1_84 = arith.constant 1 : index
    %171 = memref.load %arg4[%c1_83, %c1_84] : memref<8x8xf32, #tpu.memory_space<smem>>
    %172 = vector.broadcast %171 : f32 to vector<2x256xf32>
    %173 = arith.mulf %37, %172 : vector<2x256xf32>
    %174 = arith.addf %170, %173 : vector<2x256xf32>
    %c1_85 = arith.constant 1 : index
    %c2_86 = arith.constant 2 : index
    %175 = memref.load %arg4[%c1_85, %c2_86] : memref<8x8xf32, #tpu.memory_space<smem>>
    %176 = vector.broadcast %175 : f32 to vector<2x256xf32>
    %177 = arith.mulf %53, %176 : vector<2x256xf32>
    %178 = arith.addf %174, %177 : vector<2x256xf32>
    %c1_87 = arith.constant 1 : index
    %c3_88 = arith.constant 3 : index
    %179 = memref.load %arg4[%c1_87, %c3_88] : memref<8x8xf32, #tpu.memory_space<smem>>
    %180 = vector.broadcast %179 : f32 to vector<2x256xf32>
    %181 = arith.mulf %69, %180 : vector<2x256xf32>
    %182 = arith.addf %178, %181 : vector<2x256xf32>
    %c1_89 = arith.constant 1 : index
    %c4_90 = arith.constant 4 : index
    %183 = memref.load %arg4[%c1_89, %c4_90] : memref<8x8xf32, #tpu.memory_space<smem>>
    %184 = vector.broadcast %183 : f32 to vector<2x256xf32>
    %185 = arith.mulf %85, %184 : vector<2x256xf32>
    %186 = arith.addf %182, %185 : vector<2x256xf32>
    %c1_91 = arith.constant 1 : index
    %c5_92 = arith.constant 5 : index
    %187 = memref.load %arg4[%c1_91, %c5_92] : memref<8x8xf32, #tpu.memory_space<smem>>
    %188 = vector.broadcast %187 : f32 to vector<2x256xf32>
    %189 = arith.mulf %101, %188 : vector<2x256xf32>
    %190 = arith.addf %186, %189 : vector<2x256xf32>
    %c1_93 = arith.constant 1 : index
    %c6_94 = arith.constant 6 : index
    %191 = memref.load %arg4[%c1_93, %c6_94] : memref<8x8xf32, #tpu.memory_space<smem>>
    %192 = vector.broadcast %191 : f32 to vector<2x256xf32>
    %193 = arith.mulf %117, %192 : vector<2x256xf32>
    %194 = arith.addf %190, %193 : vector<2x256xf32>
    %c1_95 = arith.constant 1 : index
    %c7_96 = arith.constant 7 : index
    %195 = memref.load %arg4[%c1_95, %c7_96] : memref<8x8xf32, #tpu.memory_space<smem>>
    %196 = vector.broadcast %195 : f32 to vector<2x256xf32>
    %197 = arith.mulf %133, %196 : vector<2x256xf32>
    %198 = arith.addf %194, %197 : vector<2x256xf32>
    %c1_97 = arith.constant 1 : index
    %199 = memref.load %arg5[%c1_97] : memref<8xf32, #tpu.memory_space<smem>>
    %200 = vector.broadcast %199 : f32 to vector<2x256xf32>
    %201 = arith.addf %198, %200 : vector<2x256xf32>
    %c2_98 = arith.constant 2 : index
    %c0_99 = arith.constant 0 : index
    %202 = memref.load %arg4[%c2_98, %c0_99] : memref<8x8xf32, #tpu.memory_space<smem>>
    %203 = vector.broadcast %202 : f32 to vector<2x256xf32>
    %204 = arith.mulf %21, %203 : vector<2x256xf32>
    %c2_100 = arith.constant 2 : index
    %c1_101 = arith.constant 1 : index
    %205 = memref.load %arg4[%c2_100, %c1_101] : memref<8x8xf32, #tpu.memory_space<smem>>
    %206 = vector.broadcast %205 : f32 to vector<2x256xf32>
    %207 = arith.mulf %37, %206 : vector<2x256xf32>
    %208 = arith.addf %204, %207 : vector<2x256xf32>
    %c2_102 = arith.constant 2 : index
    %c2_103 = arith.constant 2 : index
    %209 = memref.load %arg4[%c2_102, %c2_103] : memref<8x8xf32, #tpu.memory_space<smem>>
    %210 = vector.broadcast %209 : f32 to vector<2x256xf32>
    %211 = arith.mulf %53, %210 : vector<2x256xf32>
    %212 = arith.addf %208, %211 : vector<2x256xf32>
    %c2_104 = arith.constant 2 : index
    %c3_105 = arith.constant 3 : index
    %213 = memref.load %arg4[%c2_104, %c3_105] : memref<8x8xf32, #tpu.memory_space<smem>>
    %214 = vector.broadcast %213 : f32 to vector<2x256xf32>
    %215 = arith.mulf %69, %214 : vector<2x256xf32>
    %216 = arith.addf %212, %215 : vector<2x256xf32>
    %c2_106 = arith.constant 2 : index
    %c4_107 = arith.constant 4 : index
    %217 = memref.load %arg4[%c2_106, %c4_107] : memref<8x8xf32, #tpu.memory_space<smem>>
    %218 = vector.broadcast %217 : f32 to vector<2x256xf32>
    %219 = arith.mulf %85, %218 : vector<2x256xf32>
    %220 = arith.addf %216, %219 : vector<2x256xf32>
    %c2_108 = arith.constant 2 : index
    %c5_109 = arith.constant 5 : index
    %221 = memref.load %arg4[%c2_108, %c5_109] : memref<8x8xf32, #tpu.memory_space<smem>>
    %222 = vector.broadcast %221 : f32 to vector<2x256xf32>
    %223 = arith.mulf %101, %222 : vector<2x256xf32>
    %224 = arith.addf %220, %223 : vector<2x256xf32>
    %c2_110 = arith.constant 2 : index
    %c6_111 = arith.constant 6 : index
    %225 = memref.load %arg4[%c2_110, %c6_111] : memref<8x8xf32, #tpu.memory_space<smem>>
    %226 = vector.broadcast %225 : f32 to vector<2x256xf32>
    %227 = arith.mulf %117, %226 : vector<2x256xf32>
    %228 = arith.addf %224, %227 : vector<2x256xf32>
    %c2_112 = arith.constant 2 : index
    %c7_113 = arith.constant 7 : index
    %229 = memref.load %arg4[%c2_112, %c7_113] : memref<8x8xf32, #tpu.memory_space<smem>>
    %230 = vector.broadcast %229 : f32 to vector<2x256xf32>
    %231 = arith.mulf %133, %230 : vector<2x256xf32>
    %232 = arith.addf %228, %231 : vector<2x256xf32>
    %c2_114 = arith.constant 2 : index
    %233 = memref.load %arg5[%c2_114] : memref<8xf32, #tpu.memory_space<smem>>
    %234 = vector.broadcast %233 : f32 to vector<2x256xf32>
    %235 = arith.addf %232, %234 : vector<2x256xf32>
    %c3_115 = arith.constant 3 : index
    %c0_116 = arith.constant 0 : index
    %236 = memref.load %arg4[%c3_115, %c0_116] : memref<8x8xf32, #tpu.memory_space<smem>>
    %237 = vector.broadcast %236 : f32 to vector<2x256xf32>
    %238 = arith.mulf %21, %237 : vector<2x256xf32>
    %c3_117 = arith.constant 3 : index
    %c1_118 = arith.constant 1 : index
    %239 = memref.load %arg4[%c3_117, %c1_118] : memref<8x8xf32, #tpu.memory_space<smem>>
    %240 = vector.broadcast %239 : f32 to vector<2x256xf32>
    %241 = arith.mulf %37, %240 : vector<2x256xf32>
    %242 = arith.addf %238, %241 : vector<2x256xf32>
    %c3_119 = arith.constant 3 : index
    %c2_120 = arith.constant 2 : index
    %243 = memref.load %arg4[%c3_119, %c2_120] : memref<8x8xf32, #tpu.memory_space<smem>>
    %244 = vector.broadcast %243 : f32 to vector<2x256xf32>
    %245 = arith.mulf %53, %244 : vector<2x256xf32>
    %246 = arith.addf %242, %245 : vector<2x256xf32>
    %c3_121 = arith.constant 3 : index
    %c3_122 = arith.constant 3 : index
    %247 = memref.load %arg4[%c3_121, %c3_122] : memref<8x8xf32, #tpu.memory_space<smem>>
    %248 = vector.broadcast %247 : f32 to vector<2x256xf32>
    %249 = arith.mulf %69, %248 : vector<2x256xf32>
    %250 = arith.addf %246, %249 : vector<2x256xf32>
    %c3_123 = arith.constant 3 : index
    %c4_124 = arith.constant 4 : index
    %251 = memref.load %arg4[%c3_123, %c4_124] : memref<8x8xf32, #tpu.memory_space<smem>>
    %252 = vector.broadcast %251 : f32 to vector<2x256xf32>
    %253 = arith.mulf %85, %252 : vector<2x256xf32>
    %254 = arith.addf %250, %253 : vector<2x256xf32>
    %c3_125 = arith.constant 3 : index
    %c5_126 = arith.constant 5 : index
    %255 = memref.load %arg4[%c3_125, %c5_126] : memref<8x8xf32, #tpu.memory_space<smem>>
    %256 = vector.broadcast %255 : f32 to vector<2x256xf32>
    %257 = arith.mulf %101, %256 : vector<2x256xf32>
    %258 = arith.addf %254, %257 : vector<2x256xf32>
    %c3_127 = arith.constant 3 : index
    %c6_128 = arith.constant 6 : index
    %259 = memref.load %arg4[%c3_127, %c6_128] : memref<8x8xf32, #tpu.memory_space<smem>>
    %260 = vector.broadcast %259 : f32 to vector<2x256xf32>
    %261 = arith.mulf %117, %260 : vector<2x256xf32>
    %262 = arith.addf %258, %261 : vector<2x256xf32>
    %c3_129 = arith.constant 3 : index
    %c7_130 = arith.constant 7 : index
    %263 = memref.load %arg4[%c3_129, %c7_130] : memref<8x8xf32, #tpu.memory_space<smem>>
    %264 = vector.broadcast %263 : f32 to vector<2x256xf32>
    %265 = arith.mulf %133, %264 : vector<2x256xf32>
    %266 = arith.addf %262, %265 : vector<2x256xf32>
    %c3_131 = arith.constant 3 : index
    %267 = memref.load %arg5[%c3_131] : memref<8xf32, #tpu.memory_space<smem>>
    %268 = vector.broadcast %267 : f32 to vector<2x256xf32>
    %269 = arith.addf %266, %268 : vector<2x256xf32>
    %c4_132 = arith.constant 4 : index
    %c0_133 = arith.constant 0 : index
    %270 = memref.load %arg4[%c4_132, %c0_133] : memref<8x8xf32, #tpu.memory_space<smem>>
    %271 = vector.broadcast %270 : f32 to vector<2x256xf32>
    %272 = arith.mulf %21, %271 : vector<2x256xf32>
    %c4_134 = arith.constant 4 : index
    %c1_135 = arith.constant 1 : index
    %273 = memref.load %arg4[%c4_134, %c1_135] : memref<8x8xf32, #tpu.memory_space<smem>>
    %274 = vector.broadcast %273 : f32 to vector<2x256xf32>
    %275 = arith.mulf %37, %274 : vector<2x256xf32>
    %276 = arith.addf %272, %275 : vector<2x256xf32>
    %c4_136 = arith.constant 4 : index
    %c2_137 = arith.constant 2 : index
    %277 = memref.load %arg4[%c4_136, %c2_137] : memref<8x8xf32, #tpu.memory_space<smem>>
    %278 = vector.broadcast %277 : f32 to vector<2x256xf32>
    %279 = arith.mulf %53, %278 : vector<2x256xf32>
    %280 = arith.addf %276, %279 : vector<2x256xf32>
    %c4_138 = arith.constant 4 : index
    %c3_139 = arith.constant 3 : index
    %281 = memref.load %arg4[%c4_138, %c3_139] : memref<8x8xf32, #tpu.memory_space<smem>>
    %282 = vector.broadcast %281 : f32 to vector<2x256xf32>
    %283 = arith.mulf %69, %282 : vector<2x256xf32>
    %284 = arith.addf %280, %283 : vector<2x256xf32>
    %c4_140 = arith.constant 4 : index
    %c4_141 = arith.constant 4 : index
    %285 = memref.load %arg4[%c4_140, %c4_141] : memref<8x8xf32, #tpu.memory_space<smem>>
    %286 = vector.broadcast %285 : f32 to vector<2x256xf32>
    %287 = arith.mulf %85, %286 : vector<2x256xf32>
    %288 = arith.addf %284, %287 : vector<2x256xf32>
    %c4_142 = arith.constant 4 : index
    %c5_143 = arith.constant 5 : index
    %289 = memref.load %arg4[%c4_142, %c5_143] : memref<8x8xf32, #tpu.memory_space<smem>>
    %290 = vector.broadcast %289 : f32 to vector<2x256xf32>
    %291 = arith.mulf %101, %290 : vector<2x256xf32>
    %292 = arith.addf %288, %291 : vector<2x256xf32>
    %c4_144 = arith.constant 4 : index
    %c6_145 = arith.constant 6 : index
    %293 = memref.load %arg4[%c4_144, %c6_145] : memref<8x8xf32, #tpu.memory_space<smem>>
    %294 = vector.broadcast %293 : f32 to vector<2x256xf32>
    %295 = arith.mulf %117, %294 : vector<2x256xf32>
    %296 = arith.addf %292, %295 : vector<2x256xf32>
    %c4_146 = arith.constant 4 : index
    %c7_147 = arith.constant 7 : index
    %297 = memref.load %arg4[%c4_146, %c7_147] : memref<8x8xf32, #tpu.memory_space<smem>>
    %298 = vector.broadcast %297 : f32 to vector<2x256xf32>
    %299 = arith.mulf %133, %298 : vector<2x256xf32>
    %300 = arith.addf %296, %299 : vector<2x256xf32>
    %c4_148 = arith.constant 4 : index
    %301 = memref.load %arg5[%c4_148] : memref<8xf32, #tpu.memory_space<smem>>
    %302 = vector.broadcast %301 : f32 to vector<2x256xf32>
    %303 = arith.addf %300, %302 : vector<2x256xf32>
    %c5_149 = arith.constant 5 : index
    %c0_150 = arith.constant 0 : index
    %304 = memref.load %arg4[%c5_149, %c0_150] : memref<8x8xf32, #tpu.memory_space<smem>>
    %305 = vector.broadcast %304 : f32 to vector<2x256xf32>
    %306 = arith.mulf %21, %305 : vector<2x256xf32>
    %c5_151 = arith.constant 5 : index
    %c1_152 = arith.constant 1 : index
    %307 = memref.load %arg4[%c5_151, %c1_152] : memref<8x8xf32, #tpu.memory_space<smem>>
    %308 = vector.broadcast %307 : f32 to vector<2x256xf32>
    %309 = arith.mulf %37, %308 : vector<2x256xf32>
    %310 = arith.addf %306, %309 : vector<2x256xf32>
    %c5_153 = arith.constant 5 : index
    %c2_154 = arith.constant 2 : index
    %311 = memref.load %arg4[%c5_153, %c2_154] : memref<8x8xf32, #tpu.memory_space<smem>>
    %312 = vector.broadcast %311 : f32 to vector<2x256xf32>
    %313 = arith.mulf %53, %312 : vector<2x256xf32>
    %314 = arith.addf %310, %313 : vector<2x256xf32>
    %c5_155 = arith.constant 5 : index
    %c3_156 = arith.constant 3 : index
    %315 = memref.load %arg4[%c5_155, %c3_156] : memref<8x8xf32, #tpu.memory_space<smem>>
    %316 = vector.broadcast %315 : f32 to vector<2x256xf32>
    %317 = arith.mulf %69, %316 : vector<2x256xf32>
    %318 = arith.addf %314, %317 : vector<2x256xf32>
    %c5_157 = arith.constant 5 : index
    %c4_158 = arith.constant 4 : index
    %319 = memref.load %arg4[%c5_157, %c4_158] : memref<8x8xf32, #tpu.memory_space<smem>>
    %320 = vector.broadcast %319 : f32 to vector<2x256xf32>
    %321 = arith.mulf %85, %320 : vector<2x256xf32>
    %322 = arith.addf %318, %321 : vector<2x256xf32>
    %c5_159 = arith.constant 5 : index
    %c5_160 = arith.constant 5 : index
    %323 = memref.load %arg4[%c5_159, %c5_160] : memref<8x8xf32, #tpu.memory_space<smem>>
    %324 = vector.broadcast %323 : f32 to vector<2x256xf32>
    %325 = arith.mulf %101, %324 : vector<2x256xf32>
    %326 = arith.addf %322, %325 : vector<2x256xf32>
    %c5_161 = arith.constant 5 : index
    %c6_162 = arith.constant 6 : index
    %327 = memref.load %arg4[%c5_161, %c6_162] : memref<8x8xf32, #tpu.memory_space<smem>>
    %328 = vector.broadcast %327 : f32 to vector<2x256xf32>
    %329 = arith.mulf %117, %328 : vector<2x256xf32>
    %330 = arith.addf %326, %329 : vector<2x256xf32>
    %c5_163 = arith.constant 5 : index
    %c7_164 = arith.constant 7 : index
    %331 = memref.load %arg4[%c5_163, %c7_164] : memref<8x8xf32, #tpu.memory_space<smem>>
    %332 = vector.broadcast %331 : f32 to vector<2x256xf32>
    %333 = arith.mulf %133, %332 : vector<2x256xf32>
    %334 = arith.addf %330, %333 : vector<2x256xf32>
    %c5_165 = arith.constant 5 : index
    %335 = memref.load %arg5[%c5_165] : memref<8xf32, #tpu.memory_space<smem>>
    %336 = vector.broadcast %335 : f32 to vector<2x256xf32>
    %337 = arith.addf %334, %336 : vector<2x256xf32>
    %c6_166 = arith.constant 6 : index
    %c0_167 = arith.constant 0 : index
    %338 = memref.load %arg4[%c6_166, %c0_167] : memref<8x8xf32, #tpu.memory_space<smem>>
    %339 = vector.broadcast %338 : f32 to vector<2x256xf32>
    %340 = arith.mulf %21, %339 : vector<2x256xf32>
    %c6_168 = arith.constant 6 : index
    %c1_169 = arith.constant 1 : index
    %341 = memref.load %arg4[%c6_168, %c1_169] : memref<8x8xf32, #tpu.memory_space<smem>>
    %342 = vector.broadcast %341 : f32 to vector<2x256xf32>
    %343 = arith.mulf %37, %342 : vector<2x256xf32>
    %344 = arith.addf %340, %343 : vector<2x256xf32>
    %c6_170 = arith.constant 6 : index
    %c2_171 = arith.constant 2 : index
    %345 = memref.load %arg4[%c6_170, %c2_171] : memref<8x8xf32, #tpu.memory_space<smem>>
    %346 = vector.broadcast %345 : f32 to vector<2x256xf32>
    %347 = arith.mulf %53, %346 : vector<2x256xf32>
    %348 = arith.addf %344, %347 : vector<2x256xf32>
    %c6_172 = arith.constant 6 : index
    %c3_173 = arith.constant 3 : index
    %349 = memref.load %arg4[%c6_172, %c3_173] : memref<8x8xf32, #tpu.memory_space<smem>>
    %350 = vector.broadcast %349 : f32 to vector<2x256xf32>
    %351 = arith.mulf %69, %350 : vector<2x256xf32>
    %352 = arith.addf %348, %351 : vector<2x256xf32>
    %c6_174 = arith.constant 6 : index
    %c4_175 = arith.constant 4 : index
    %353 = memref.load %arg4[%c6_174, %c4_175] : memref<8x8xf32, #tpu.memory_space<smem>>
    %354 = vector.broadcast %353 : f32 to vector<2x256xf32>
    %355 = arith.mulf %85, %354 : vector<2x256xf32>
    %356 = arith.addf %352, %355 : vector<2x256xf32>
    %c6_176 = arith.constant 6 : index
    %c5_177 = arith.constant 5 : index
    %357 = memref.load %arg4[%c6_176, %c5_177] : memref<8x8xf32, #tpu.memory_space<smem>>
    %358 = vector.broadcast %357 : f32 to vector<2x256xf32>
    %359 = arith.mulf %101, %358 : vector<2x256xf32>
    %360 = arith.addf %356, %359 : vector<2x256xf32>
    %c6_178 = arith.constant 6 : index
    %c6_179 = arith.constant 6 : index
    %361 = memref.load %arg4[%c6_178, %c6_179] : memref<8x8xf32, #tpu.memory_space<smem>>
    %362 = vector.broadcast %361 : f32 to vector<2x256xf32>
    %363 = arith.mulf %117, %362 : vector<2x256xf32>
    %364 = arith.addf %360, %363 : vector<2x256xf32>
    %c6_180 = arith.constant 6 : index
    %c7_181 = arith.constant 7 : index
    %365 = memref.load %arg4[%c6_180, %c7_181] : memref<8x8xf32, #tpu.memory_space<smem>>
    %366 = vector.broadcast %365 : f32 to vector<2x256xf32>
    %367 = arith.mulf %133, %366 : vector<2x256xf32>
    %368 = arith.addf %364, %367 : vector<2x256xf32>
    %c6_182 = arith.constant 6 : index
    %369 = memref.load %arg5[%c6_182] : memref<8xf32, #tpu.memory_space<smem>>
    %370 = vector.broadcast %369 : f32 to vector<2x256xf32>
    %371 = arith.addf %368, %370 : vector<2x256xf32>
    %c7_183 = arith.constant 7 : index
    %c0_184 = arith.constant 0 : index
    %372 = memref.load %arg4[%c7_183, %c0_184] : memref<8x8xf32, #tpu.memory_space<smem>>
    %373 = vector.broadcast %372 : f32 to vector<2x256xf32>
    %374 = arith.mulf %21, %373 : vector<2x256xf32>
    %c7_185 = arith.constant 7 : index
    %c1_186 = arith.constant 1 : index
    %375 = memref.load %arg4[%c7_185, %c1_186] : memref<8x8xf32, #tpu.memory_space<smem>>
    %376 = vector.broadcast %375 : f32 to vector<2x256xf32>
    %377 = arith.mulf %37, %376 : vector<2x256xf32>
    %378 = arith.addf %374, %377 : vector<2x256xf32>
    %c7_187 = arith.constant 7 : index
    %c2_188 = arith.constant 2 : index
    %379 = memref.load %arg4[%c7_187, %c2_188] : memref<8x8xf32, #tpu.memory_space<smem>>
    %380 = vector.broadcast %379 : f32 to vector<2x256xf32>
    %381 = arith.mulf %53, %380 : vector<2x256xf32>
    %382 = arith.addf %378, %381 : vector<2x256xf32>
    %c7_189 = arith.constant 7 : index
    %c3_190 = arith.constant 3 : index
    %383 = memref.load %arg4[%c7_189, %c3_190] : memref<8x8xf32, #tpu.memory_space<smem>>
    %384 = vector.broadcast %383 : f32 to vector<2x256xf32>
    %385 = arith.mulf %69, %384 : vector<2x256xf32>
    %386 = arith.addf %382, %385 : vector<2x256xf32>
    %c7_191 = arith.constant 7 : index
    %c4_192 = arith.constant 4 : index
    %387 = memref.load %arg4[%c7_191, %c4_192] : memref<8x8xf32, #tpu.memory_space<smem>>
    %388 = vector.broadcast %387 : f32 to vector<2x256xf32>
    %389 = arith.mulf %85, %388 : vector<2x256xf32>
    %390 = arith.addf %386, %389 : vector<2x256xf32>
    %c7_193 = arith.constant 7 : index
    %c5_194 = arith.constant 5 : index
    %391 = memref.load %arg4[%c7_193, %c5_194] : memref<8x8xf32, #tpu.memory_space<smem>>
    %392 = vector.broadcast %391 : f32 to vector<2x256xf32>
    %393 = arith.mulf %101, %392 : vector<2x256xf32>
    %394 = arith.addf %390, %393 : vector<2x256xf32>
    %c7_195 = arith.constant 7 : index
    %c6_196 = arith.constant 6 : index
    %395 = memref.load %arg4[%c7_195, %c6_196] : memref<8x8xf32, #tpu.memory_space<smem>>
    %396 = vector.broadcast %395 : f32 to vector<2x256xf32>
    %397 = arith.mulf %117, %396 : vector<2x256xf32>
    %398 = arith.addf %394, %397 : vector<2x256xf32>
    %c7_197 = arith.constant 7 : index
    %c7_198 = arith.constant 7 : index
    %399 = memref.load %arg4[%c7_197, %c7_198] : memref<8x8xf32, #tpu.memory_space<smem>>
    %400 = vector.broadcast %399 : f32 to vector<2x256xf32>
    %401 = arith.mulf %133, %400 : vector<2x256xf32>
    %402 = arith.addf %398, %401 : vector<2x256xf32>
    %c7_199 = arith.constant 7 : index
    %403 = memref.load %arg5[%c7_199] : memref<8xf32, #tpu.memory_space<smem>>
    %404 = vector.broadcast %403 : f32 to vector<2x256xf32>
    %405 = arith.addf %402, %404 : vector<2x256xf32>
    %406 = math.tanh %167 : vector<2x256xf32>
    %c0_200 = arith.constant 0 : index
    %c0_201 = arith.constant 0 : index
    %c0_202 = arith.constant 0 : index
    %407 = vector.load %arg6[%c0_200, %c0_201, %c0_202] : memref<2x12x256xf32, #tpu.memory_space<vmem>>, vector<2x1x256xf32>
    %408 = vector.shape_cast %407 : vector<2x1x256xf32> to vector<2x256xf32>
    %409 = vector.shape_cast %406 : vector<2x256xf32> to vector<2x1x256xf32>
    tpu.vector_store %arg6[%c0_200, %c0_201, %c0_202], %409 {strides = array<i32>} : memref<2x12x256xf32, #tpu.memory_space<vmem>>, vector<2x1x256xf32>,
    %410 = math.tanh %201 : vector<2x256xf32>
    %c0_203 = arith.constant 0 : index
    %c1_204 = arith.constant 1 : index
    %c0_205 = arith.constant 0 : index
    %411 = vector.load %arg6[%c0_203, %c1_204, %c0_205] : memref<2x12x256xf32, #tpu.memory_space<vmem>>, vector<2x1x256xf32>
    %412 = vector.shape_cast %411 : vector<2x1x256xf32> to vector<2x256xf32>
    %413 = vector.shape_cast %410 : vector<2x256xf32> to vector<2x1x256xf32>
    tpu.vector_store %arg6[%c0_203, %c1_204, %c0_205], %413 {strides = array<i32>} : memref<2x12x256xf32, #tpu.memory_space<vmem>>, vector<2x1x256xf32>,
    %414 = math.tanh %235 : vector<2x256xf32>
    %c0_206 = arith.constant 0 : index
    %c2_207 = arith.constant 2 : index
    %c0_208 = arith.constant 0 : index
    %415 = vector.load %arg6[%c0_206, %c2_207, %c0_208] : memref<2x12x256xf32, #tpu.memory_space<vmem>>, vector<2x1x256xf32>
    %416 = vector.shape_cast %415 : vector<2x1x256xf32> to vector<2x256xf32>
    %417 = vector.shape_cast %414 : vector<2x256xf32> to vector<2x1x256xf32>
    tpu.vector_store %arg6[%c0_206, %c2_207, %c0_208], %417 {strides = array<i32>} : memref<2x12x256xf32, #tpu.memory_space<vmem>>, vector<2x1x256xf32>,
    %418 = math.tanh %269 : vector<2x256xf32>
    %c0_209 = arith.constant 0 : index
    %c3_210 = arith.constant 3 : index
    %c0_211 = arith.constant 0 : index
    %419 = vector.load %arg6[%c0_209, %c3_210, %c0_211] : memref<2x12x256xf32, #tpu.memory_space<vmem>>, vector<2x1x256xf32>
    %420 = vector.shape_cast %419 : vector<2x1x256xf32> to vector<2x256xf32>
    %421 = vector.shape_cast %418 : vector<2x256xf32> to vector<2x1x256xf32>
    tpu.vector_store %arg6[%c0_209, %c3_210, %c0_211], %421 {strides = array<i32>} : memref<2x12x256xf32, #tpu.memory_space<vmem>>, vector<2x1x256xf32>,
    %422 = math.tanh %303 : vector<2x256xf32>
    %c0_212 = arith.constant 0 : index
    %c4_213 = arith.constant 4 : index
    %c0_214 = arith.constant 0 : index
    %423 = vector.load %arg6[%c0_212, %c4_213, %c0_214] : memref<2x12x256xf32, #tpu.memory_space<vmem>>, vector<2x1x256xf32>
    %424 = vector.shape_cast %423 : vector<2x1x256xf32> to vector<2x256xf32>
    %425 = vector.shape_cast %422 : vector<2x256xf32> to vector<2x1x256xf32>
    tpu.vector_store %arg6[%c0_212, %c4_213, %c0_214], %425 {strides = array<i32>} : memref<2x12x256xf32, #tpu.memory_space<vmem>>, vector<2x1x256xf32>,
    %426 = math.tanh %337 : vector<2x256xf32>
    %c0_215 = arith.constant 0 : index
    %c5_216 = arith.constant 5 : index
    %c0_217 = arith.constant 0 : index
    %427 = vector.load %arg6[%c0_215, %c5_216, %c0_217] : memref<2x12x256xf32, #tpu.memory_space<vmem>>, vector<2x1x256xf32>
    %428 = vector.shape_cast %427 : vector<2x1x256xf32> to vector<2x256xf32>
    %429 = vector.shape_cast %426 : vector<2x256xf32> to vector<2x1x256xf32>
    tpu.vector_store %arg6[%c0_215, %c5_216, %c0_217], %429 {strides = array<i32>} : memref<2x12x256xf32, #tpu.memory_space<vmem>>, vector<2x1x256xf32>,
    %430 = math.tanh %371 : vector<2x256xf32>
    %c0_218 = arith.constant 0 : index
    %c6_219 = arith.constant 6 : index
    %c0_220 = arith.constant 0 : index
    %431 = vector.load %arg6[%c0_218, %c6_219, %c0_220] : memref<2x12x256xf32, #tpu.memory_space<vmem>>, vector<2x1x256xf32>
    %432 = vector.shape_cast %431 : vector<2x1x256xf32> to vector<2x256xf32>
    %433 = vector.shape_cast %430 : vector<2x256xf32> to vector<2x1x256xf32>
    tpu.vector_store %arg6[%c0_218, %c6_219, %c0_220], %433 {strides = array<i32>} : memref<2x12x256xf32, #tpu.memory_space<vmem>>, vector<2x1x256xf32>,
    %434 = math.tanh %405 : vector<2x256xf32>
    %c0_221 = arith.constant 0 : index
    %c7_222 = arith.constant 7 : index
    %c0_223 = arith.constant 0 : index
    %435 = vector.load %arg6[%c0_221, %c7_222, %c0_223] : memref<2x12x256xf32, #tpu.memory_space<vmem>>, vector<2x1x256xf32>
    %436 = vector.shape_cast %435 : vector<2x1x256xf32> to vector<2x256xf32>
    %437 = vector.shape_cast %434 : vector<2x256xf32> to vector<2x1x256xf32>
    tpu.vector_store %arg6[%c0_221, %c7_222, %c0_223], %437 {strides = array<i32>} : memref<2x12x256xf32, #tpu.memory_space<vmem>>, vector<2x1x256xf32>,
    %cst_224 = arith.constant 1.000000e+00 : f32
    %438 = vector.broadcast %cst_224 : f32 to vector<2x4x256xf32>
    %c0_225 = arith.constant 0 : index
    %c8 = arith.constant 8 : index
    %c0_226 = arith.constant 0 : index
    %439 = vector.load %arg6[%c0_225, %c8, %c0_226] : memref<2x12x256xf32, #tpu.memory_space<vmem>>, vector<2x4x256xf32>
    tpu.vector_store %arg6[%c0_225, %c8, %c0_226], %438 {strides = array<i32>} : memref<2x12x256xf32, #tpu.memory_space<vmem>>, vector<2x4x256xf32>,
    return
  }
  func.func @transform_0(%arg0: i32) -> (i32, i32, i32) {
    %c0_i32 = arith.constant 0 : i32
    %c0_i32_0 = arith.constant 0 : i32
    %c0_i32_1 = arith.constant 0 : i32
    return %c0_i32, %c0_i32_0, %arg0 : i32, i32, i32
  }
  func.func @transform_1(%arg0: i32) -> (i32, i32) {
    %c0_i32 = arith.constant 0 : i32
    %c0_i32_0 = arith.constant 0 : i32
    %c0_i32_1 = arith.constant 0 : i32
    return %c0_i32, %c0_i32_0 : i32, i32
  }
  func.func @transform_2(%arg0: i32) -> i32 {
    %c0_i32 = arith.constant 0 : i32
    %c0_i32_0 = arith.constant 0 : i32
    return %c0_i32 : i32
  }
  func.func @transform_3(%arg0: i32) -> (i32, i32) {
    %c0_i32 = arith.constant 0 : i32
    %c0_i32_0 = arith.constant 0 : i32
    %c0_i32_1 = arith.constant 0 : i32
    return %c0_i32, %c0_i32_0 : i32, i32
  }
  func.func @transform_4(%arg0: i32) -> i32 {
    %c0_i32 = arith.constant 0 : i32
    %c0_i32_0 = arith.constant 0 : i32
    return %c0_i32 : i32
  }
  func.func @transform_5(%arg0: i32) -> (i32, i32, i32) {
    %c0_i32 = arith.constant 0 : i32
    %c0_i32_0 = arith.constant 0 : i32
    %c0_i32_1 = arith.constant 0 : i32
    return %c0_i32, %c0_i32_0, %arg0 : i32, i32, i32
  }
}

</mosaic_0001>

<llo_original>
// kernel: tpu_custom_call.1
$region0: #{tpu_custom_call.1}
  #allocation0 [shape = 'u32[]', space=smem, size = 0x4, offset = 0x4, fixed_abs, tag = 'smem constant byte address 0x4 - core index']
  #allocation1 [shape = 'u32[144,128]{1,0:T(1,128)}', space=vmem, size = 0x12000, scoped, tag = 'internal scratch']
  %s0 = inlined_call_operand.vmem [shape: f32[2,3,256], index: 0, kind: input, shape index: {}]
  %s1 = inlined_call_operand.vmem [shape: f32[8,3], index: 1, kind: input, shape index: {}]
  %s2 = inlined_call_operand.vmem [shape: f32[8], index: 2, kind: input, shape index: {}]
  %s3 = inlined_call_operand.vmem [shape: f32[8,8], index: 3, kind: input, shape index: {}]
  %s4 = inlined_call_operand.vmem [shape: f32[8], index: 4, kind: input, shape index: {}]
  %s5 = inlined_call_operand.vmem [shape: f32[2,12,256], index: 5, kind: output, shape index: {}]
  %s6 = sld [smem:[#allocation0]]
  $region46: #{tpu_custom_call.1} parent=0
    _
  %s8 = ssub.s32 1, %s6
  %s9 = scalar_select 0, %s8, %s6
  $region1: #{tpu_custom_call.1} parent=0
    #allocation2 [shape = 'u8[4096]{0}', space=smem, size = 0x1000, scoped, tag = 'input window, operand 1, single buffered']
    #allocation3 [shape = 's32[1]{0}', space=sflag, size = 0x4, scoped, tag = 'scoped memory for tpu_custom_call.1']
    #allocation4 [shape = 'u8[512]{0}', space=smem, size = 0x200, scoped, tag = 'input window, operand 2, single buffered']
    #allocation5 [shape = 's32[1]{0}', space=sflag, size = 0x4, scoped, tag = 'scoped memory for tpu_custom_call.1']
    #allocation6 [shape = 'u8[4096]{0}', space=smem, size = 0x1000, scoped, tag = 'input window, operand 3, single buffered']
    #allocation7 [shape = 'u8[512]{0}', space=smem, size = 0x200, scoped, tag = 'input window, operand 4, single buffered']
    #allocation8 [shape = 's32[1]{0}', space=sflag, size = 0x4, scoped, tag = 'scoped memory for tpu_custom_call.1']
    %10 = vsyncpa [#allocation3], 0
    %11 = vsyncpa [#allocation5], 0
    %12 = vsyncpa [#allocation8], 0
    // Predicated region
    $region2: #{tpu_custom_call.1} parent=1 // pred_check
      _
    $region3: #{tpu_custom_call.1} parent=1 // pred_check_branch
      %14 = sbr.rel (0) target = $region5
    $region4: #{tpu_custom_call.1} parent=1 // pred_region
      _
    $region5: #{tpu_custom_call.1} parent=1 // pred_fallthru
      _
    // Predicated region
    $region6: #{tpu_custom_call.1} parent=1 // pred_check
      _
    $region7: #{tpu_custom_call.1} parent=1 // pred_check_branch
      %16 = sbr.rel (0) target = $region9
    $region8: #{tpu_custom_call.1} parent=1 // pred_region
      %s18 = ssub.s32 128, 128
      %19 = vsyncadd [#allocation3], %s18
      %s21 = sshll.u32 %s1, 4
      %s22 = int_to_ptr.vmem [resolvable:$true] %s21
      %24 = dma.vmem_to_smem %s22, 128, [#allocation2], [#allocation3]
    $region9: #{tpu_custom_call.1} parent=1 // pred_fallthru
      _
    // Predicated region
    $region10: #{tpu_custom_call.1} parent=1 // pred_check
      _
    $region11: #{tpu_custom_call.1} parent=1 // pred_check_branch
      %26 = sbr.rel (0) target = $region13
    $region12: #{tpu_custom_call.1} parent=1 // pred_region
      %s28 = ssub.s32 16, 16
      %29 = vsyncadd [#allocation5], %s28
      %s31 = sshll.u32 %s2, 4
      %s32 = int_to_ptr.vmem [resolvable:$true] %s31
      %34 = dma.vmem_to_smem %s32, 16, [#allocation4], [#allocation5]
    $region13: #{tpu_custom_call.1} parent=1 // pred_fallthru
      _
    // Predicated region
    $region14: #{tpu_custom_call.1} parent=1 // pred_check
      _
    $region15: #{tpu_custom_call.1} parent=1 // pred_check_branch
      %36 = sbr.rel (0) target = $region17
    $region16: #{tpu_custom_call.1} parent=1 // pred_region
      %s38 = ssub.s32 128, 128
      %39 = vsyncadd [#allocation5], %s38
      %s41 = sshll.u32 %s3, 4
      %s42 = int_to_ptr.vmem [resolvable:$true] %s41
      %44 = dma.vmem_to_smem %s42, 128, [#allocation6], [#allocation5]
    $region17: #{tpu_custom_call.1} parent=1 // pred_fallthru
      _
    // Predicated region
    $region18: #{tpu_custom_call.1} parent=1 // pred_check
      _
    $region19: #{tpu_custom_call.1} parent=1 // pred_check_branch
      %46 = sbr.rel (0) target = $region21
    $region20: #{tpu_custom_call.1} parent=1 // pred_region
      %s48 = ssub.s32 16, 16
      %49 = vsyncadd [#allocation8], %s48
      %s51 = sshll.u32 %s4, 4
      %s52 = int_to_ptr.vmem [resolvable:$true] %s51
      %54 = dma.vmem_to_smem %s52, 16, [#allocation7], [#allocation8]
    $region21: #{tpu_custom_call.1} parent=1 // pred_fallthru
      _
    // Predicated region
    $region22: #{tpu_custom_call.1} parent=1 // pred_check
      _
    $region23: #{tpu_custom_call.1} parent=1 // pred_check_branch
      %56 = sbr.rel (0) target = $region25
    $region24: #{tpu_custom_call.1} parent=1 // pred_region
      %57 = dma.done [#allocation3], 128
    $region25: #{tpu_custom_call.1} parent=1 // pred_fallthru
      _
    // Predicated region
    $region26: #{tpu_custom_call.1} parent=1 // pred_check
      _
    $region27: #{tpu_custom_call.1} parent=1 // pred_check_branch
      %59 = sbr.rel (0) target = $region29
    $region28: #{tpu_custom_call.1} parent=1 // pred_region
      %60 = dma.done [#allocation5], 16
    $region29: #{tpu_custom_call.1} parent=1 // pred_fallthru
      _
    // Predicated region
    $region30: #{tpu_custom_call.1} parent=1 // pred_check
      _
    $region31: #{tpu_custom_call.1} parent=1 // pred_check_branch
      %62 = sbr.rel (0) target = $region33
    $region32: #{tpu_custom_call.1} parent=1 // pred_region
      %63 = dma.done [#allocation5], 128
    $region33: #{tpu_custom_call.1} parent=1 // pred_fallthru
      _
    // Predicated region
    $region34: #{tpu_custom_call.1} parent=1 // pred_check
      _
    $region35: #{tpu_custom_call.1} parent=1 // pred_check_branch
      %65 = sbr.rel (0) target = $region37
    $region36: #{tpu_custom_call.1} parent=1 // pred_region
      %66 = dma.done [#allocation8], 16
    $region37: #{tpu_custom_call.1} parent=1 // pred_fallthru
      _
    %67 = sfence
    %v68 = vld [vmem:[%s0] ss:$4 sm:$0x3]
    %s69 = scalar_lea.vmem %s0, 8
    %v70 = vld [vmem:[%s69] ss:$4 sm:$0x3]
    %s71 = scalar_lea.vmem %s0, 1
    %v72 = vld [vmem:[%s71] ss:$4 sm:$0x3]
    %s73 = scalar_lea.vmem %s0, 9
    %v74 = vld [vmem:[%s73] ss:$4 sm:$0x3]
    %s75 = scalar_lea.vmem %s0, 2
    %v76 = vld [vmem:[%s75] ss:$4 sm:$0x3]
    %s77 = scalar_lea.vmem %s0, 10
    %v78 = vld [vmem:[%s77] ss:$4 sm:$0x3]
    %s79 = sld [smem:[#allocation2]]
    %v80 = vstv %s79
    %v81 = vmul.f32 %v68, %v80
    %v82 = vmul.f32 %v70, %v80
    %s83 = sld [smem:[#allocation2 + $0x1]]
    %v84 = vstv %s83
    %v85 = vmul.f32 %v72, %v84
    %v86 = vmul.f32 %v74, %v84
    %v87 = vadd.f32 %v81, %v85
    %v88 = vadd.f32 %v82, %v86
    %s89 = sld [smem:[#allocation2 + $0x2]]
    %v90 = vstv %s89
    %v91 = vmul.f32 %v76, %v90
    %v92 = vmul.f32 %v78, %v90
    %v93 = vadd.f32 %v87, %v91
    %v94 = vadd.f32 %v88, %v92
    %s95 = sld [smem:[#allocation4]]
    %v96 = vstv %s95
    %v97 = vadd.f32 %v93, %v96
    %v98 = vadd.f32 %v94, %v96
    %v99 = vmax.f32 %v97, 0.0
    %v100 = vmax.f32 %v98, 0.0
    %s101 = sld [smem:[#allocation2 + $0x80]]
    %v102 = vstv %s101
    %v103 = vmul.f32 %v68, %v102
    %v104 = vmul.f32 %v70, %v102
    %s105 = sld [smem:[#allocation2 + $0x81]]
    %v106 = vstv %s105
    %v107 = vmul.f32 %v72, %v106
    %v108 = vmul.f32 %v74, %v106
    %v109 = vadd.f32 %v103, %v107
    %v110 = vadd.f32 %v104, %v108
    %s111 = sld [smem:[#allocation2 + $0x82]]
    %v112 = vstv %s111
    %v113 = vmul.f32 %v76, %v112
    %v114 = vmul.f32 %v78, %v112
    %v115 = vadd.f32 %v109, %v113
    %v116 = vadd.f32 %v110, %v114
    %s117 = sld [smem:[#allocation4 + $0x1]]
    %v118 = vstv %s117
    %v119 = vadd.f32 %v115, %v118
    %v120 = vadd.f32 %v116, %v118
    %v121 = vmax.f32 %v119, 0.0
    %v122 = vmax.f32 %v120, 0.0
    %s123 = sld [smem:[#allocation2 + $0x100]]
    %v124 = vstv %s123
    %v125 = vmul.f32 %v68, %v124
    %v126 = vmul.f32 %v70, %v124
    %s127 = sld [smem:[#allocation2 + $0x101]]
    %v128 = vstv %s127
    %v129 = vmul.f32 %v72, %v128
    %v130 = vmul.f32 %v74, %v128
    %v131 = vadd.f32 %v125, %v129
    %v132 = vadd.f32 %v126, %v130
    %s133 = sld [smem:[#allocation2 + $0x102]]
    %v134 = vstv %s133
    %v135 = vmul.f32 %v76, %v134
    %v136 = vmul.f32 %v78, %v134
    %v137 = vadd.f32 %v131, %v135
    %v138 = vadd.f32 %v132, %v136
    %s139 = sld [smem:[#allocation4 + $0x2]]
    %v140 = vstv %s139
    %v141 = vadd.f32 %v137, %v140
    %v142 = vadd.f32 %v138, %v140
    %v143 = vmax.f32 %v141, 0.0
    %v144 = vmax.f32 %v142, 0.0
    %s145 = sld [smem:[#allocation2 + $0x180]]
    %v146 = vstv %s145
    %v147 = vmul.f32 %v68, %v146
    %v148 = vmul.f32 %v70, %v146
    %s149 = sld [smem:[#allocation2 + $0x181]]
    %v150 = vstv %s149
    %v151 = vmul.f32 %v72, %v150
    %v152 = vmul.f32 %v74, %v150
    %v153 = vadd.f32 %v147, %v151
    %v154 = vadd.f32 %v148, %v152
    %s155 = sld [smem:[#allocation2 + $0x182]]
    %v156 = vstv %s155
    %v157 = vmul.f32 %v76, %v156
    %v158 = vmul.f32 %v78, %v156
    %v159 = vadd.f32 %v153, %v157
    %v160 = vadd.f32 %v154, %v158
    %s161 = sld [smem:[#allocation4 + $0x3]]
    %v162 = vstv %s161
    %v163 = vadd.f32 %v159, %v162
    %v164 = vadd.f32 %v160, %v162
    %v165 = vmax.f32 %v163, 0.0
    %v166 = vmax.f32 %v164, 0.0
    %s167 = sld [smem:[#allocation2 + $0x200]]
    %v168 = vstv %s167
    %v169 = vmul.f32 %v68, %v168
    %v170 = vmul.f32 %v70, %v168
    %s171 = sld [smem:[#allocation2 + $0x201]]
    %v172 = vstv %s171
    %v173 = vmul.f32 %v72, %v172
    %v174 = vmul.f32 %v74, %v172
    %v175 = vadd.f32 %v169, %v173
    %v176 = vadd.f32 %v170, %v174
    %s177 = sld [smem:[#allocation2 + $0x202]]
    %v178 = vstv %s177
    %v179 = vmul.f32 %v76, %v178
    %v180 = vmul.f32 %v78, %v178
    %v181 = vadd.f32 %v175, %v179
    %v182 = vadd.f32 %v176, %v180
    %s183 = sld [smem:[#allocation4 + $0x4]]
    %v184 = vstv %s183
    %v185 = vadd.f32 %v181, %v184
    %v186 = vadd.f32 %v182, %v184
    %v187 = vmax.f32 %v185, 0.0
    %v188 = vmax.f32 %v186, 0.0
    %s189 = sld [smem:[#allocation2 + $0x280]]
    %v190 = vstv %s189
    %v191 = vmul.f32 %v68, %v190
    %v192 = vmul.f32 %v70, %v190
    %s193 = sld [smem:[#allocation2 + $0x281]]
    %v194 = vstv %s193
    %v195 = vmul.f32 %v72, %v194
    %v196 = vmul.f32 %v74, %v194
    %v197 = vadd.f32 %v191, %v195
    %v198 = vadd.f32 %v192, %v196
    %s199 = sld [smem:[#allocation2 + $0x282]]
    %v200 = vstv %s199
    %v201 = vmul.f32 %v76, %v200
    %v202 = vmul.f32 %v78, %v200
    %v203 = vadd.f32 %v197, %v201
    %v204 = vadd.f32 %v198, %v202
    %s205 = sld [smem:[#allocation4 + $0x5]]
    %v206 = vstv %s205
    %v207 = vadd.f32 %v203, %v206
    %v208 = vadd.f32 %v204, %v206
    %v209 = vmax.f32 %v207, 0.0
    %v210 = vmax.f32 %v208, 0.0
    %s211 = sld [smem:[#allocation2 + $0x300]]
    %v212 = vstv %s211
    %v213 = vmul.f32 %v68, %v212
    %v214 = vmul.f32 %v70, %v212
    %s215 = sld [smem:[#allocation2 + $0x301]]
    %v216 = vstv %s215
    %v217 = vmul.f32 %v72, %v216
    %v218 = vmul.f32 %v74, %v216
    %v219 = vadd.f32 %v213, %v217
    %v220 = vadd.f32 %v214, %v218
    %s221 = sld [smem:[#allocation2 + $0x302]]
    %v222 = vstv %s221
    %v223 = vmul.f32 %v76, %v222
    %v224 = vmul.f32 %v78, %v222
    %v225 = vadd.f32 %v219, %v223
    %v226 = vadd.f32 %v220, %v224
    %s227 = sld [smem:[#allocation4 + $0x6]]
    %v228 = vstv %s227
    %v229 = vadd.f32 %v225, %v228
    %v230 = vadd.f32 %v226, %v228
    %v231 = vmax.f32 %v229, 0.0
    %v232 = vmax.f32 %v230, 0.0
    %s233 = sld [smem:[#allocation2 + $0x380]]
    %v234 = vstv %s233
    %v235 = vmul.f32 %v68, %v234
    %v236 = vmul.f32 %v70, %v234
    %s237 = sld [smem:[#allocation2 + $0x381]]
    %v238 = vstv %s237
    %v239 = vmul.f32 %v72, %v238
    %v240 = vmul.f32 %v74, %v238
    %v241 = vadd.f32 %v235, %v239
    %v242 = vadd.f32 %v236, %v240
    %s243 = sld [smem:[#allocation2 + $0x382]]
    %v244 = vstv %s243
    %v245 = vmul.f32 %v76, %v244
    %v246 = vmul.f32 %v78, %v244
    %v247 = vadd.f32 %v241, %v245
    %v248 = vadd.f32 %v242, %v246
    %s249 = sld [smem:[#allocation4 + $0x7]]
    %v250 = vstv %s249
    %v251 = vadd.f32 %v247, %v250
    %v252 = vadd.f32 %v248, %v250
    %v253 = vmax.f32 %v251, 0.0
    %v254 = vmax.f32 %v252, 0.0
    %s255 = sld [smem:[#allocation6]]
    %v256 = vstv %s255
    %v257 = vmul.f32 %v99, %v256
    %v258 = vmul.f32 %v100, %v256
    %s259 = sld [smem:[#allocation6 + $0x1]]
    %v260 = vstv %s259
    %v261 = vmul.f32 %v121, %v260
    %v262 = vmul.f32 %v122, %v260
    %v263 = vadd.f32 %v257, %v261
    %v264 = vadd.f32 %v258, %v262
    %s265 = sld [smem:[#allocation6 + $0x2]]
    %v266 = vstv %s265
    %v267 = vmul.f32 %v143, %v266
    %v268 = vmul.f32 %v144, %v266
    %v269 = vadd.f32 %v263, %v267
    %v270 = vadd.f32 %v264, %v268
    %s271 = sld [smem:[#allocation6 + $0x3]]
    %v272 = vstv %s271
    %v273 = vmul.f32 %v165, %v272
    %v274 = vmul.f32 %v166, %v272
    %v275 = vadd.f32 %v269, %v273
    %v276 = vadd.f32 %v270, %v274
    %s277 = sld [smem:[#allocation6 + $0x4]]
    %v278 = vstv %s277
    %v279 = vmul.f32 %v187, %v278
    %v280 = vmul.f32 %v188, %v278
    %v281 = vadd.f32 %v275, %v279
    %v282 = vadd.f32 %v276, %v280
    %s283 = sld [smem:[#allocation6 + $0x5]]
    %v284 = vstv %s283
    %v285 = vmul.f32 %v209, %v284
    %v286 = vmul.f32 %v210, %v284
    %v287 = vadd.f32 %v281, %v285
    %v288 = vadd.f32 %v282, %v286
    %s289 = sld [smem:[#allocation6 + $0x6]]
    %v290 = vstv %s289
    %v291 = vmul.f32 %v231, %v290
    %v292 = vmul.f32 %v232, %v290
    %v293 = vadd.f32 %v287, %v291
    %v294 = vadd.f32 %v288, %v292
    %s295 = sld [smem:[#allocation6 + $0x7]]
    %v296 = vstv %s295
    %v297 = vmul.f32 %v253, %v296
    %v298 = vmul.f32 %v254, %v296
    %v299 = vadd.f32 %v293, %v297
    %v300 = vadd.f32 %v294, %v298
    %s301 = sld [smem:[#allocation7]]
    %v302 = vstv %s301
    %v303 = vadd.f32 %v299, %v302
    %v304 = vadd.f32 %v300, %v302
    %s305 = sld [smem:[#allocation6 + $0x80]]
    %v306 = vstv %s305
    %v307 = vmul.f32 %v99, %v306
    %v308 = vmul.f32 %v100, %v306
    %s309 = sld [smem:[#allocation6 + $0x81]]
    %v310 = vstv %s309
    %v311 = vmul.f32 %v121, %v310
    %v312 = vmul.f32 %v122, %v310
    %v313 = vadd.f32 %v307, %v311
    %v314 = vadd.f32 %v308, %v312
    %s315 = sld [smem:[#allocation6 + $0x82]]
    %v316 = vstv %s315
    %v317 = vmul.f32 %v143, %v316
    %v318 = vmul.f32 %v144, %v316
    %v319 = vadd.f32 %v313, %v317
    %v320 = vadd.f32 %v314, %v318
    %s321 = sld [smem:[#allocation6 + $0x83]]
    %v322 = vstv %s321
    %v323 = vmul.f32 %v165, %v322
    %v324 = vmul.f32 %v166, %v322
    %v325 = vadd.f32 %v319, %v323
    %v326 = vadd.f32 %v320, %v324
    %s327 = sld [smem:[#allocation6 + $0x84]]
    %v328 = vstv %s327
    %v329 = vmul.f32 %v187, %v328
    %v330 = vmul.f32 %v188, %v328
    %v331 = vadd.f32 %v325, %v329
    %v332 = vadd.f32 %v326, %v330
    %s333 = sld [smem:[#allocation6 + $0x85]]
    %v334 = vstv %s333
    %v335 = vmul.f32 %v209, %v334
    %v336 = vmul.f32 %v210, %v334
    %v337 = vadd.f32 %v331, %v335
    %v338 = vadd.f32 %v332, %v336
    %s339 = sld [smem:[#allocation6 + $0x86]]
    %v340 = vstv %s339
    %v341 = vmul.f32 %v231, %v340
    %v342 = vmul.f32 %v232, %v340
    %v343 = vadd.f32 %v337, %v341
    %v344 = vadd.f32 %v338, %v342
    %s345 = sld [smem:[#allocation6 + $0x87]]
    %v346 = vstv %s345
    %v347 = vmul.f32 %v253, %v346
    %v348 = vmul.f32 %v254, %v346
    %v349 = vadd.f32 %v343, %v347
    %v350 = vadd.f32 %v344, %v348
    %s351 = sld [smem:[#allocation7 + $0x1]]
    %v352 = vstv %s351
    %v353 = vadd.f32 %v349, %v352
    %v354 = vadd.f32 %v350, %v352
    %s355 = sld [smem:[#allocation6 + $0x100]]
    %v356 = vstv %s355
    %v357 = vmul.f32 %v99, %v356
    %v358 = vmul.f32 %v100, %v356
    %s359 = sld [smem:[#allocation6 + $0x101]]
    %v360 = vstv %s359
    %v361 = vmul.f32 %v121, %v360
    %v362 = vmul.f32 %v122, %v360
    %v363 = vadd.f32 %v357, %v361
    %v364 = vadd.f32 %v358, %v362
    %s365 = sld [smem:[#allocation6 + $0x102]]
    %v366 = vstv %s365
    %v367 = vmul.f32 %v143, %v366
    %v368 = vmul.f32 %v144, %v366
    %v369 = vadd.f32 %v363, %v367
    %v370 = vadd.f32 %v364, %v368
    %s371 = sld [smem:[#allocation6 + $0x103]]
    %v372 = vstv %s371
    %v373 = vmul.f32 %v165, %v372
    %v374 = vmul.f32 %v166, %v372
    %v375 = vadd.f32 %v369, %v373
    %v376 = vadd.f32 %v370, %v374
    %s377 = sld [smem:[#allocation6 + $0x104]]
    %v378 = vstv %s377
    %v379 = vmul.f32 %v187, %v378
    %v380 = vmul.f32 %v188, %v378
    %v381 = vadd.f32 %v375, %v379
    %v382 = vadd.f32 %v376, %v380
    %s383 = sld [smem:[#allocation6 + $0x105]]
    %v384 = vstv %s383
    %v385 = vmul.f32 %v209, %v384
    %v386 = vmul.f32 %v210, %v384
    %v387 = vadd.f32 %v381, %v385
    %v388 = vadd.f32 %v382, %v386
    %s389 = sld [smem:[#allocation6 + $0x106]]
    %v390 = vstv %s389
    %v391 = vmul.f32 %v231, %v390
    %v392 = vmul.f32 %v232, %v390
    %v393 = vadd.f32 %v387, %v391
    %v394 = vadd.f32 %v388, %v392
    %s395 = sld [smem:[#allocation6 + $0x107]]
    %v396 = vstv %s395
    %v397 = vmul.f32 %v253, %v396
    %v398 = vmul.f32 %v254, %v396
    %v399 = vadd.f32 %v393, %v397
    %v400 = vadd.f32 %v394, %v398
    %s401 = sld [smem:[#allocation7 + $0x2]]
    %v402 = vstv %s401
    %v403 = vadd.f32 %v399, %v402
    %v404 = vadd.f32 %v400, %v402
    %s405 = sld [smem:[#allocation6 + $0x180]]
    %v406 = vstv %s405
    %v407 = vmul.f32 %v99, %v406
    %v408 = vmul.f32 %v100, %v406
    %s409 = sld [smem:[#allocation6 + $0x181]]
    %v410 = vstv %s409
    %v411 = vmul.f32 %v121, %v410
    %v412 = vmul.f32 %v122, %v410
    %v413 = vadd.f32 %v407, %v411
    %v414 = vadd.f32 %v408, %v412
    %s415 = sld [smem:[#allocation6 + $0x182]]
    %v416 = vstv %s415
    %v417 = vmul.f32 %v143, %v416
    %v418 = vmul.f32 %v144, %v416
    %v419 = vadd.f32 %v413, %v417
    %v420 = vadd.f32 %v414, %v418
    %s421 = sld [smem:[#allocation6 + $0x183]]
    %v422 = vstv %s421
    %v423 = vmul.f32 %v165, %v422
    %v424 = vmul.f32 %v166, %v422
    %v425 = vadd.f32 %v419, %v423
    %v426 = vadd.f32 %v420, %v424
    %s427 = sld [smem:[#allocation6 + $0x184]]
    %v428 = vstv %s427
    %v429 = vmul.f32 %v187, %v428
    %v430 = vmul.f32 %v188, %v428
    %v431 = vadd.f32 %v425, %v429
    %v432 = vadd.f32 %v426, %v430
    %s433 = sld [smem:[#allocation6 + $0x185]]
    %v434 = vstv %s433
    %v435 = vmul.f32 %v209, %v434
    %v436 = vmul.f32 %v210, %v434
    %v437 = vadd.f32 %v431, %v435
    %v438 = vadd.f32 %v432, %v436
    %s439 = sld [smem:[#allocation6 + $0x186]]
    %v440 = vstv %s439
    %v441 = vmul.f32 %v231, %v440
    %v442 = vmul.f32 %v232, %v440
    %v443 = vadd.f32 %v437, %v441
    %v444 = vadd.f32 %v438, %v442
    %s445 = sld [smem:[#allocation6 + $0x187]]
    %v446 = vstv %s445
    %v447 = vmul.f32 %v253, %v446
    %v448 = vmul.f32 %v254, %v446
    %v449 = vadd.f32 %v443, %v447
    %v450 = vadd.f32 %v444, %v448
    %s451 = sld [smem:[#allocation7 + $0x3]]
    %v452 = vstv %s451
    %v453 = vadd.f32 %v449, %v452
    %v454 = vadd.f32 %v450, %v452
    %s455 = sld [smem:[#allocation6 + $0x200]]
    %v456 = vstv %s455
    %v457 = vmul.f32 %v99, %v456
    %v458 = vmul.f32 %v100, %v456
    %s459 = sld [smem:[#allocation6 + $0x201]]
    %v460 = vstv %s459
    %v461 = vmul.f32 %v121, %v460
    %v462 = vmul.f32 %v122, %v460
    %v463 = vadd.f32 %v457, %v461
    %v464 = vadd.f32 %v458, %v462
    %s465 = sld [smem:[#allocation6 + $0x202]]
    %v466 = vstv %s465
    %v467 = vmul.f32 %v143, %v466
    %v468 = vmul.f32 %v144, %v466
    %v469 = vadd.f32 %v463, %v467
    %v470 = vadd.f32 %v464, %v468
    %s471 = sld [smem:[#allocation6 + $0x203]]
    %v472 = vstv %s471
    %v473 = vmul.f32 %v165, %v472
    %v474 = vmul.f32 %v166, %v472
    %v475 = vadd.f32 %v469, %v473
    %v476 = vadd.f32 %v470, %v474
    %s477 = sld [smem:[#allocation6 + $0x204]]
    %v478 = vstv %s477
    %v479 = vmul.f32 %v187, %v478
    %v480 = vmul.f32 %v188, %v478
    %v481 = vadd.f32 %v475, %v479
    %v482 = vadd.f32 %v476, %v480
    %s483 = sld [smem:[#allocation6 + $0x205]]
    %v484 = vstv %s483
    %v485 = vmul.f32 %v209, %v484
    %v486 = vmul.f32 %v210, %v484
    %v487 = vadd.f32 %v481, %v485
    %v488 = vadd.f32 %v482, %v486
    %s489 = sld [smem:[#allocation6 + $0x206]]
    %v490 = vstv %s489
    %v491 = vmul.f32 %v231, %v490
    %v492 = vmul.f32 %v232, %v490
    %v493 = vadd.f32 %v487, %v491
    %v494 = vadd.f32 %v488, %v492
    %s495 = sld [smem:[#allocation6 + $0x207]]
    %v496 = vstv %s495
    %v497 = vmul.f32 %v253, %v496
    %v498 = vmul.f32 %v254, %v496
    %v499 = vadd.f32 %v493, %v497
    %v500 = vadd.f32 %v494, %v498
    %s501 = sld [smem:[#allocation7 + $0x4]]
    %v502 = vstv %s501
    %v503 = vadd.f32 %v499, %v502
    %v504 = vadd.f32 %v500, %v502
    %s505 = sld [smem:[#allocation6 + $0x280]]
    %v506 = vstv %s505
    %v507 = vmul.f32 %v99, %v506
    %v508 = vmul.f32 %v100, %v506
    %s509 = sld [smem:[#allocation6 + $0x281]]
    %v510 = vstv %s509
    %v511 = vmul.f32 %v121, %v510
    %v512 = vmul.f32 %v122, %v510
    %v513 = vadd.f32 %v507, %v511
    %v514 = vadd.f32 %v508, %v512
    %s515 = sld [smem:[#allocation6 + $0x282]]
    %v516 = vstv %s515
    %v517 = vmul.f32 %v143, %v516
    %v518 = vmul.f32 %v144, %v516
    %v519 = vadd.f32 %v513, %v517
    %v520 = vadd.f32 %v514, %v518
    %s521 = sld [smem:[#allocation6 + $0x283]]
    %v522 = vstv %s521
    %v523 = vmul.f32 %v165, %v522
    %v524 = vmul.f32 %v166, %v522
    %v525 = vadd.f32 %v519, %v523
    %v526 = vadd.f32 %v520, %v524
    %s527 = sld [smem:[#allocation6 + $0x284]]
    %v528 = vstv %s527
    %v529 = vmul.f32 %v187, %v528
    %v530 = vmul.f32 %v188, %v528
    %v531 = vadd.f32 %v525, %v529
    %v532 = vadd.f32 %v526, %v530
    %s533 = sld [smem:[#allocation6 + $0x285]]
    %v534 = vstv %s533
    %v535 = vmul.f32 %v209, %v534
    %v536 = vmul.f32 %v210, %v534
    %v537 = vadd.f32 %v531, %v535
    %v538 = vadd.f32 %v532, %v536
    %s539 = sld [smem:[#allocation6 + $0x286]]
    %v540 = vstv %s539
    %v541 = vmul.f32 %v231, %v540
    %v542 = vmul.f32 %v232, %v540
    %v543 = vadd.f32 %v537, %v541
    %v544 = vadd.f32 %v538, %v542
    %s545 = sld [smem:[#allocation6 + $0x287]]
    %v546 = vstv %s545
    %v547 = vmul.f32 %v253, %v546
    %v548 = vmul.f32 %v254, %v546
    %v549 = vadd.f32 %v543, %v547
    %v550 = vadd.f32 %v544, %v548
    %s551 = sld [smem:[#allocation7 + $0x5]]
    %v552 = vstv %s551
    %v553 = vadd.f32 %v549, %v552
    %v554 = vadd.f32 %v550, %v552
    %s555 = sld [smem:[#allocation6 + $0x300]]
    %v556 = vstv %s555
    %v557 = vmul.f32 %v99, %v556
    %v558 = vmul.f32 %v100, %v556
    %s559 = sld [smem:[#allocation6 + $0x301]]
    %v560 = vstv %s559
    %v561 = vmul.f32 %v121, %v560
    %v562 = vmul.f32 %v122, %v560
    %v563 = vadd.f32 %v557, %v561
    %v564 = vadd.f32 %v558, %v562
    %s565 = sld [smem:[#allocation6 + $0x302]]
    %v566 = vstv %s565
    %v567 = vmul.f32 %v143, %v566
    %v568 = vmul.f32 %v144, %v566
    %v569 = vadd.f32 %v563, %v567
    %v570 = vadd.f32 %v564, %v568
    %s571 = sld [smem:[#allocation6 + $0x303]]
    %v572 = vstv %s571
    %v573 = vmul.f32 %v165, %v572
    %v574 = vmul.f32 %v166, %v572
    %v575 = vadd.f32 %v569, %v573
    %v576 = vadd.f32 %v570, %v574
    %s577 = sld [smem:[#allocation6 + $0x304]]
    %v578 = vstv %s577
    %v579 = vmul.f32 %v187, %v578
    %v580 = vmul.f32 %v188, %v578
    %v581 = vadd.f32 %v575, %v579
    %v582 = vadd.f32 %v576, %v580
    %s583 = sld [smem:[#allocation6 + $0x305]]
    %v584 = vstv %s583
    %v585 = vmul.f32 %v209, %v584
    %v586 = vmul.f32 %v210, %v584
    %v587 = vadd.f32 %v581, %v585
    %v588 = vadd.f32 %v582, %v586
    %s589 = sld [smem:[#allocation6 + $0x306]]
    %v590 = vstv %s589
    %v591 = vmul.f32 %v231, %v590
    %v592 = vmul.f32 %v232, %v590
    %v593 = vadd.f32 %v587, %v591
    %v594 = vadd.f32 %v588, %v592
    %s595 = sld [smem:[#allocation6 + $0x307]]
    %v596 = vstv %s595
    %v597 = vmul.f32 %v253, %v596
    %v598 = vmul.f32 %v254, %v596
    %v599 = vadd.f32 %v593, %v597
    %v600 = vadd.f32 %v594, %v598
    %s601 = sld [smem:[#allocation7 + $0x6]]
    %v602 = vstv %s601
    %v603 = vadd.f32 %v599, %v602
    %v604 = vadd.f32 %v600, %v602
    %s605 = sld [smem:[#allocation6 + $0x380]]
    %v606 = vstv %s605
    %v607 = vmul.f32 %v99, %v606
    %v608 = vmul.f32 %v100, %v606
    %s609 = sld [smem:[#allocation6 + $0x381]]
    %v610 = vstv %s609
    %v611 = vmul.f32 %v121, %v610
    %v612 = vmul.f32 %v122, %v610
    %v613 = vadd.f32 %v607, %v611
    %v614 = vadd.f32 %v608, %v612
    %s615 = sld [smem:[#allocation6 + $0x382]]
    %v616 = vstv %s615
    %v617 = vmul.f32 %v143, %v616
    %v618 = vmul.f32 %v144, %v616
    %v619 = vadd.f32 %v613, %v617
    %v620 = vadd.f32 %v614, %v618
    %s621 = sld [smem:[#allocation6 + $0x383]]
    %v622 = vstv %s621
    %v623 = vmul.f32 %v165, %v622
    %v624 = vmul.f32 %v166, %v622
    %v625 = vadd.f32 %v619, %v623
    %v626 = vadd.f32 %v620, %v624
    %s627 = sld [smem:[#allocation6 + $0x384]]
    %v628 = vstv %s627
    %v629 = vmul.f32 %v187, %v628
    %v630 = vmul.f32 %v188, %v628
    %v631 = vadd.f32 %v625, %v629
    %v632 = vadd.f32 %v626, %v630
    %s633 = sld [smem:[#allocation6 + $0x385]]
    %v634 = vstv %s633
    %v635 = vmul.f32 %v209, %v634
    %v636 = vmul.f32 %v210, %v634
    %v637 = vadd.f32 %v631, %v635
    %v638 = vadd.f32 %v632, %v636
    %s639 = sld [smem:[#allocation6 + $0x386]]
    %v640 = vstv %s639
    %v641 = vmul.f32 %v231, %v640
    %v642 = vmul.f32 %v232, %v640
    %v643 = vadd.f32 %v637, %v641
    %v644 = vadd.f32 %v638, %v642
    %s645 = sld [smem:[#allocation6 + $0x387]]
    %v646 = vstv %s645
    %v647 = vmul.f32 %v253, %v646
    %v648 = vmul.f32 %v254, %v646
    %v649 = vadd.f32 %v643, %v647
    %v650 = vadd.f32 %v644, %v648
    %s651 = sld [smem:[#allocation7 + $0x7]]
    %v652 = vstv %s651
    %v653 = vadd.f32 %v649, %v652
    %v654 = vadd.f32 %v650, %v652
    %v655 = vtanh.pop %v303
    %v656 = vtanh.pop %v304
    %v657 = vlaneseq
    %vm658 = vcmp.ge.s32.totalorder %v657, 0
    %vm659 = vcmp.lt.s32.totalorder %v657, 256
    %vm660 = vmand %vm658, %vm659
    %661 = vst.msk [vmem:[%s5] ss:$8 sm:$0x3] %vm660, %v655
    %662 = vst.msk [vmem:[%s5] ss:$8 sm:$0x0] %vm660, %v655
    %s663 = scalar_lea.vmem %s5, 32
    %664 = vst.msk [vmem:[%s663] ss:$8 sm:$0x3] %vm660, %v656
    %665 = vst.msk [vmem:[%s663] ss:$8 sm:$0x0] %vm660, %v656
    %v666 = vtanh.pop %v353
    %v667 = vtanh.pop %v354
    %s668 = scalar_lea.vmem %s5, 1
    %669 = vst.msk [vmem:[%s668] ss:$8 sm:$0x3] %vm660, %v666
    %670 = vst.msk [vmem:[%s668] ss:$8 sm:$0x0] %vm660, %v666
    %s671 = scalar_lea.vmem %s5, 33
    %672 = vst.msk [vmem:[%s671] ss:$8 sm:$0x3] %vm660, %v667
    %673 = vst.msk [vmem:[%s671] ss:$8 sm:$0x0] %vm660, %v667
    %v674 = vtanh.pop %v403
    %v675 = vtanh.pop %v404
    %s676 = scalar_lea.vmem %s5, 2
    %677 = vst.msk [vmem:[%s676] ss:$8 sm:$0x3] %vm660, %v674
    %678 = vst.msk [vmem:[%s676] ss:$8 sm:$0x0] %vm660, %v674
    %s679 = scalar_lea.vmem %s5, 34
    %680 = vst.msk [vmem:[%s679] ss:$8 sm:$0x3] %vm660, %v675
    %681 = vst.msk [vmem:[%s679] ss:$8 sm:$0x0] %vm660, %v675
    %v682 = vtanh.pop %v453
    %v683 = vtanh.pop %v454
    %s684 = scalar_lea.vmem %s5, 3
    %685 = vst.msk [vmem:[%s684] ss:$8 sm:$0x3] %vm660, %v682
    %686 = vst.msk [vmem:[%s684] ss:$8 sm:$0x0] %vm660, %v682
    %s687 = scalar_lea.vmem %s5, 35
    %688 = vst.msk [vmem:[%s687] ss:$8 sm:$0x3] %vm660, %v683
    %689 = vst.msk [vmem:[%s687] ss:$8 sm:$0x0] %vm660, %v683
    %v690 = vtanh.pop %v503
    %v691 = vtanh.pop %v504
    %s692 = scalar_lea.vmem %s5, 4
    %693 = vst.msk [vmem:[%s692] ss:$8 sm:$0x3] %vm660, %v690
    %694 = vst.msk [vmem:[%s692] ss:$8 sm:$0x0] %vm660, %v690
    %s695 = scalar_lea.vmem %s5, 36
    %696 = vst.msk [vmem:[%s695] ss:$8 sm:$0x3] %vm660, %v691
    %697 = vst.msk [vmem:[%s695] ss:$8 sm:$0x0] %vm660, %v691
    %v698 = vtanh.pop %v553
    %v699 = vtanh.pop %v554
    %s700 = scalar_lea.vmem %s5, 5
    %701 = vst.msk [vmem:[%s700] ss:$8 sm:$0x3] %vm660, %v698
    %702 = vst.msk [vmem:[%s700] ss:$8 sm:$0x0] %vm660, %v698
    %s703 = scalar_lea.vmem %s5, 37
    %704 = vst.msk [vmem:[%s703] ss:$8 sm:$0x3] %vm660, %v699
    %705 = vst.msk [vmem:[%s703] ss:$8 sm:$0x0] %vm660, %v699
    %v706 = vtanh.pop %v603
    %v707 = vtanh.pop %v604
    %s708 = scalar_lea.vmem %s5, 6
    %709 = vst.msk [vmem:[%s708] ss:$8 sm:$0x3] %vm660, %v706
    %710 = vst.msk [vmem:[%s708] ss:$8 sm:$0x0] %vm660, %v706
    %s711 = scalar_lea.vmem %s5, 38
    %712 = vst.msk [vmem:[%s711] ss:$8 sm:$0x3] %vm660, %v707
    %713 = vst.msk [vmem:[%s711] ss:$8 sm:$0x0] %vm660, %v707
    %v714 = vtanh.pop %v653
    %v715 = vtanh.pop %v654
    %s716 = scalar_lea.vmem %s5, 7
    %717 = vst.msk [vmem:[%s716] ss:$8 sm:$0x3] %vm660, %v714
    %718 = vst.msk [vmem:[%s716] ss:$8 sm:$0x0] %vm660, %v714
    %s719 = scalar_lea.vmem %s5, 39
    %720 = vst.msk [vmem:[%s719] ss:$8 sm:$0x3] %vm660, %v715
    %721 = vst.msk [vmem:[%s719] ss:$8 sm:$0x0] %vm660, %v715
    %722 = vst [vmem:[%s5 + $0x10] sm:$0xf] 1.0
    %723 = vst [vmem:[%s5 + $0x18] sm:$0xf] 1.0
    %724 = vst [vmem:[%s5 + $0x30] sm:$0xf] 1.0
    %725 = vst [vmem:[%s5 + $0x38] sm:$0xf] 1.0
    // Predicated region
    $region38: #{tpu_custom_call.1} parent=1 // pred_check
      _
    $region39: #{tpu_custom_call.1} parent=1 // pred_check_branch
      %727 = sbr.rel (0) target = $region41
    $region40: #{tpu_custom_call.1} parent=1 // pred_region
      _
    $region41: #{tpu_custom_call.1} parent=1 // pred_fallthru
      _
    // Predicated region
    $region42: #{tpu_custom_call.1} parent=1 // pred_check
      _
    $region43: #{tpu_custom_call.1} parent=1 // pred_check_branch
      %729 = sbr.rel (0) target = $region45
    $region44: #{tpu_custom_call.1} parent=1 // pred_region
      _
    $region45: #{tpu_custom_call.1} parent=1 // pred_fallthru
      _
    %730 = vsyncpa [#allocation3], 1
    %731 = vsyncpa [#allocation5], 1
    %732 = vsyncpa [#allocation8], 1

</llo_original>
